<compile_context>
chip_gen: v7x
topology: tpu7x:2x2x1
jax: 0.10.0
libtpu: 0.0.40
codegen_flags: <defaults>
</compile_context>

<pallas_src>
import functools
import math

import jax
import jax.numpy as jnp
from jax import lax
from jax.experimental import pallas as pl
from jax.experimental.pallas import tpu as pltpu


def _vae_attn_kernel(xq_ref, k_ref, v_ref, wq_ref, bq_ref, wo_ref, bo_ref,
                     o_ref, q_scr, m_scr, l_scr, acc_scr,
                     *, compute_dtype, kv_len, masked):
    """One (batch, q_tile, kv_tile) grid step of flash-style self-attention.

    Layouts:
      xq_ref : (1, C, tq)  query-side x tile (channels on sublanes) - also residual
      k_ref  : (1, C, tk)  pre-projected keys, channels-major
      v_ref  : (1, tk, C)  pre-projected values, seq-major (plain P@V matmul)
      wq/wo  : (C, C)      torch (out, in) layout; Wq pre-scaled by 1/sqrt(C)
      bq/bo  : (C, 1)      f32 column biases; bq pre-scaled
      q_scr  : (tq, C)     cached scaled query tile (compute dtype)
      m_scr, l_scr : (tq, 1) online-softmax running max / denom (f32)
      acc_scr: (tq, C)     un-normalized attention output (f32)
    """
    cdt = compute_dtype
    use_bf16_exp = jnp.dtype(cdt) == jnp.dtype(jnp.bfloat16)
    ki = pl.program_id(2)

    # ---- per-query-tile init (runs once per (n, qi)) -------------------------
    @pl.when(ki == 0)
    def _init():
        xq = xq_ref[0].astype(cdt)                                      # (C, tq)
        q_cs = jnp.dot(wq_ref[...], xq,
                       preferred_element_type=jnp.float32) + bq_ref[...]
        q_scr[...] = jnp.transpose(q_cs).astype(cdt)                    # (tq, C)
        m_scr[...] = jnp.full(m_scr.shape, -jnp.inf, jnp.float32)
        l_scr[...] = jnp.zeros(l_scr.shape, jnp.float32)
        acc_scr[...] = jnp.zeros(acc_scr.shape, jnp.float32)

    # ---- scores for this kv tile (K already projected + channels-major) ------
    k_cs = k_ref[0]                                                     # (C, tk)
    v_sc = v_ref[0]                                                     # (tk, C)
    s = jnp.dot(q_scr[...], k_cs, preferred_element_type=jnp.float32)   # (tq, tk)

    if masked:  # static: only emitted when S was padded to a multiple of 128
        tk = k_cs.shape[1]
        pos = ki * tk + lax.broadcasted_iota(jnp.int32, (1, tk), 1)
        s = jnp.where(pos < kv_len, s, -jnp.inf)

    # ---- online softmax update (f32 statistics) -------------------------------
    m_prev = m_scr[...]
    m_new = jnp.maximum(m_prev, jnp.max(s, axis=-1, keepdims=True))     # (tq, 1)
    alpha = jnp.exp(m_prev - m_new)                                     # (tq, 1) f32
    if use_bf16_exp:
        p = jnp.exp((s - m_new).astype(cdt))        # bf16 EUP on v6e/v7x
    else:
        p = jnp.exp(s - m_new)
    l_scr[...] = alpha * l_scr[...] + jnp.sum(p.astype(jnp.float32),
                                              axis=-1, keepdims=True)
    acc_scr[...] = alpha * acc_scr[...] + jnp.dot(
        p.astype(cdt), v_sc, preferred_element_type=jnp.float32)        # (tq, C)
    m_scr[...] = m_new

    # ---- per-query-tile finalize: normalize, out-proj, residual, store -------
    @pl.when(ki == pl.num_programs(2) - 1)
    def _finalize():
        l = l_scr[...]
        inv_l = pl.reciprocal(l, approx=True)        # EUP slot (cheap)
        inv_l = inv_l * (2.0 - l * inv_l)            # Newton step -> ~f32 accuracy
        out_sc = (acc_scr[...] * inv_l).astype(cdt)                     # (tq, C)
        # out-proj directly in channels-major: (C_out, tq) = Wo @ out^T
        out_cs = lax.dot_general(
            wo_ref[...], out_sc, (((1,), (1,)), ((), ())),
            preferred_element_type=jnp.float32)                         # (C, tq)
        out_cs = out_cs + bo_ref[...] + xq_ref[0].astype(jnp.float32)   # bias + residual
        o_ref[0] = out_cs.astype(o_ref.dtype)


def _round_up(x, m):
    return ((x + m - 1) // m) * m


def _choose_tile(s_pad, max_tile):
    """Largest multiple-of-128 tile <= max_tile that evenly divides s_pad."""
    best = 128
    for t in range(128, min(s_pad, max_tile) + 1, 128):
        if s_pad % t == 0:
            best = t
    return best


def _vmem_capacity_bytes():
    try:
        cap = getattr(pltpu.get_tpu_info(), "vmem_capacity_bytes", None)
        if cap:
            return int(cap)
    except Exception:
        pass
    return 64 << 20  # conservative fallback: v7x per-core VMEM


def vae_attention_block(x_nchw, params, *, compute_dtype=jnp.bfloat16,
                        tq=None, tk=None):
    """Forward pass of VAE_AttentionBlock on an NCHW tensor."""
    N, C, H, W = x_nchw.shape
    S = H * W
    cdt = jnp.dtype(compute_dtype)

    # Free reshape to channels-major (N, C, S); pad the sequence axis to a
    # multiple of 128 (lane-dense tiles/stores), masking padded keys in-kernel.
    x_ncs = x_nchw.reshape(N, C, S)
    S_pad = _round_up(S, 128)
    if S_pad != S:
        x_ncs = jnp.pad(x_ncs, ((0, 0), (0, 0), (0, S_pad - S)))

    # Host-side param packing: fold 1/sqrt(d_head) into Wq/bq.
    scale = 1.0 / math.sqrt(C)
    wq = (params["wq"] * scale).astype(cdt)                       # (C, C) torch (out, in)
    bq = (params["bq"] * scale).reshape(C, 1).astype(jnp.float32)
    wo = params["wo"].astype(cdt)                                 # (C, C)
    bo = params["bo"].reshape(C, 1).astype(jnp.float32)

    # Hoisted K/V projection: one GEMM each per batch (no per-q-tile recompute).
    # K stays channels-major (N, C, S); V is produced seq-major (N, S, C) so the
    # in-kernel P@V is a plain matmul with no transposes.
    x_cdt = x_ncs.astype(cdt)
    k_ncs = (jnp.einsum('oc,ncs->nos', params["wk"].astype(cdt), x_cdt,
                        preferred_element_type=jnp.float32)
             + params["bk"].astype(jnp.float32)[None, :, None]).astype(cdt)
    v_nsc = (jnp.einsum('oc,ncs->nso', params["wv"].astype(cdt), x_cdt,
                        preferred_element_type=jnp.float32)
             + params["bv"].astype(jnp.float32)[None, None, :]).astype(cdt)

    # Asymmetric tiles: big query tile amortizes q-proj / out-proj / kv re-reads.
    tq = tq if tq is not None else _choose_tile(S_pad, 1024)
    tk = tk if tk is not None else _choose_tile(S_pad, 512)
    assert S_pad % tq == 0 and S_pad % tk == 0, "tile sizes must divide padded S"
    n_q, n_k = S_pad // tq, S_pad // tk
    grid = (N, n_q, n_k)

    in_specs = [
        pl.BlockSpec((1, C, tq), lambda n, qi, ki: (n, 0, qi)),   # x (query + residual)
        pl.BlockSpec((1, C, tk), lambda n, qi, ki: (n, 0, ki)),   # K tile (channels-major)
        pl.BlockSpec((1, tk, C), lambda n, qi, ki: (n, ki, 0)),   # V tile (seq-major)
        pl.BlockSpec((C, C), lambda n, qi, ki: (0, 0)),           # Wq (scaled)
        pl.BlockSpec((C, 1), lambda n, qi, ki: (0, 0)),           # bq (scaled)
        pl.BlockSpec((C, C), lambda n, qi, ki: (0, 0)),           # Wo
        pl.BlockSpec((C, 1), lambda n, qi, ki: (0, 0)),           # bo
    ]
    out_spec = pl.BlockSpec((1, C, tq), lambda n, qi, ki: (n, 0, qi))

    scratch_shapes = [
        pltpu.VMEM((tq, C), cdt),           # cached (scaled) query tile
        pltpu.VMEM((tq, 1), jnp.float32),   # running max
        pltpu.VMEM((tq, 1), jnp.float32),   # running denom
        pltpu.VMEM((tq, C), jnp.float32),   # un-normalized attention accumulator
    ]

    # Generation-aware VMEM budget: double-buffered blocks + weights + scratch
    # + working set, with headroom; capped at 3/4 of this chip's VMEM capacity
    # (~96 MiB on v5e/v6e, ~48 MiB on v7x).
    xb = jnp.dtype(x_nchw.dtype).itemsize
    cb = cdt.itemsize
    block_bytes = C * tq * xb + C * tk * cb + tk * C * cb + C * tq * xb
    weight_bytes = 2 * C * C * cb + 2 * C * 128 * 4               # Wq, Wo + padded biases
    scratch_bytes = tq * C * (cb + 4) + 2 * tq * 128 * 4
    work_bytes = 4 * (2 * tq * tk + tq * C)                       # scores / p / temporaries
    est = 2 * (block_bytes + weight_bytes) + scratch_bytes + work_bytes
    vmem_limit = int(min(max(est * 1.25 + (4 << 20), 32 << 20),
                         _vmem_capacity_bytes() * 3 // 4))

    out_ncs = pl.pallas_call(
        functools.partial(_vae_attn_kernel, compute_dtype=cdt,
                          kv_len=S, masked=(S_pad != S)),
        out_shape=jax.ShapeDtypeStruct((N, C, S_pad), x_nchw.dtype),
        grid_spec=pltpu.PrefetchScalarGridSpec(
            num_scalar_prefetch=0,
            grid=grid,
            in_specs=in_specs,
            out_specs=out_spec,
            scratch_shapes=scratch_shapes),
        compiler_params=pltpu.CompilerParams(
            dimension_semantics=("parallel", "parallel", "arbitrary"),
            vmem_limit_bytes=vmem_limit),
    )(x_ncs, k_ncs, v_nsc, wq, bq, wo, bo)

    if S_pad != S:
        out_ncs = out_ncs[:, :, :S]
    return out_ncs.reshape(N, C, H, W)


def init_params(key, channels):
    """Deterministic init mimicking nn.Linear defaults (uniform +-1/sqrt(fan_in)).

    Weights are kept in PyTorch (out_features, in_features) layout.
    """
    c = channels
    keys = jax.random.split(key, 4)
    bound = 1.0 / math.sqrt(c)
    w_in = jax.random.uniform(keys[0], (3 * c, c), jnp.float32, -bound, bound)
    b_in = jax.random.uniform(keys[1], (3 * c,), jnp.float32, -bound, bound)
    w_out = jax.random.uniform(keys[2], (c, c), jnp.float32, -bound, bound)
    b_out = jax.random.uniform(keys[3], (c,), jnp.float32, -bound, bound)
    return {
        "wq": w_in[0 * c:1 * c], "wk": w_in[1 * c:2 * c], "wv": w_in[2 * c:3 * c],
        "bq": b_in[0 * c:1 * c], "bk": b_in[1 * c:2 * c], "bv": b_in[2 * c:3 * c],
        "wo": w_out, "bo": b_out,
        # GroupNorm(32, C) params exist in the module but are unused in forward.
        "gn_weight": jnp.ones((c,), jnp.float32),
        "gn_bias": jnp.zeros((c,), jnp.float32),
    }


def _reference(x_nchw, params):
    """Pure-JAX f32 reference of the PyTorch forward."""
    N, C, H, W = x_nchw.shape
    x = jnp.transpose(x_nchw.reshape(N, C, H * W), (0, 2, 1))     # (N, S, C)
    q = x @ params["wq"].T + params["bq"]
    k = x @ params["wk"].T + params["bk"]
    v = x @ params["wv"].T + params["bv"]
    s = (q @ jnp.swapaxes(k, -1, -2)) / math.sqrt(C)
    p = jax.nn.softmax(s, axis=-1)
    o = (p @ v) @ params["wo"].T + params["bo"]
    o = o + x
    return jnp.transpose(o, (0, 2, 1)).reshape(N, C, H, W)


if __name__ == "__main__":
    # channels must be a multiple of 32 for the module's GroupNorm(32, C) to
    # construct (even though forward never applies it).
    batch, channels, spatial = 2, 128, 16          # S = 256

    key = jax.random.PRNGKey(0)
    k_param, k_x, k_x2 = jax.random.split(key, 3)
    params = init_params(k_param, channels)
    x = jax.random.normal(k_x, (batch, channels, spatial, spatial), jnp.float32)

    ref = _reference(x, params)

    # 1) f32 compute, explicit 128-wide tiles -> grid (2, 2, 2): exercises the
    #    multi-tile online-softmax accumulation path.  Tight tolerance.
    out = vae_attention_block(x, params, compute_dtype=jnp.float32, tq=128, tk=128)
    out = jax.block_until_ready(out)
    assert out.shape == x.shape and out.dtype == x.dtype
    assert jnp.allclose(out, ref, atol=1e-4, rtol=1e-4)

    # 2) default path: bf16 MXU compute (f32 accumulation / softmax stats),
    #    default asymmetric tiling.  Looser tolerance reflects bf16 inputs.
    out_bf16 = jax.block_until_ready(vae_attention_block(x, params))
    assert out_bf16.shape == x.shape and out_bf16.dtype == x.dtype
    assert jnp.allclose(out_bf16, ref, atol=7.5e-2, rtol=7.5e-2)

    # 3) S = 144 (not a multiple of 128): pad-to-128 + key-masking path, f32,
    #    multi-tile grid, tight tolerance.
    x2 = jax.random.normal(k_x2, (batch, channels, 12, 12), jnp.float32)
    ref2 = _reference(x2, params)
    out2 = vae_attention_block(x2, params, compute_dtype=jnp.float32, tq=128, tk=128)
    out2 = jax.block_until_ready(out2)
    assert out2.shape == x2.shape and out2.dtype == x2.dtype
    assert jnp.allclose(out2, ref2, atol=1e-4, rtol=1e-4)

    print("KERNEL_OK")
</pallas_src>

<mosaic_0001>
module attributes {stable_mosaic.version = 11 : i64} {
  func.func @_vae_attn_kernel(%arg0: i32, %arg1: i32, %arg2: i32, %arg3: memref<1x128x128xf32, #tpu.memory_space<vmem>>, %arg4: memref<1x128x128xf32, #tpu.memory_space<vmem>>, %arg5: memref<1x128x128xf32, #tpu.memory_space<vmem>>, %arg6: memref<128x128xf32, #tpu.memory_space<vmem>>, %arg7: memref<128x1xf32, #tpu.memory_space<vmem>>, %arg8: memref<128x128xf32, #tpu.memory_space<vmem>>, %arg9: memref<128x1xf32, #tpu.memory_space<vmem>>, %arg10: memref<1x128x128xf32, #tpu.memory_space<vmem>>, %arg11: memref<128x128xf32, #tpu.memory_space<vmem>>, %arg12: memref<128x1xf32, #tpu.memory_space<vmem>>, %arg13: memref<128x1xf32, #tpu.memory_space<vmem>>, %arg14: memref<128x128xf32, #tpu.memory_space<vmem>>) attributes {dimension_semantics = [#tpu.dimension_semantics<parallel>, #tpu.dimension_semantics<parallel>, #tpu.dimension_semantics<arbitrary>], iteration_bounds = array<i64: 2, 2, 2>, scalar_prefetch = 0 : i64, scratch_operands = 4 : i64, tpu.core_type = #tpu.core_type<tc>, window_params = [{transform_indices = @transform_0, window_bounds = array<i64: 1, 128, 128>}, {transform_indices = @transform_1, window_bounds = array<i64: 1, 128, 128>}, {transform_indices = @transform_2, window_bounds = array<i64: 1, 128, 128>}, {pipeline_mode = #tpu.pipeline_mode<synchronous>, transform_indices = @transform_3, window_bounds = array<i64: 128, 128>}, {pipeline_mode = #tpu.pipeline_mode<synchronous>, transform_indices = @transform_4, window_bounds = array<i64: 128, 1>}, {pipeline_mode = #tpu.pipeline_mode<synchronous>, transform_indices = @transform_5, window_bounds = array<i64: 128, 128>}, {pipeline_mode = #tpu.pipeline_mode<synchronous>, transform_indices = @transform_6, window_bounds = array<i64: 128, 1>}, {transform_indices = @transform_7, window_bounds = array<i64: 1, 128, 128>}]} {
    %c0_i32 = arith.constant 0 : i32
    %0 = arith.cmpi eq, %arg2, %c0_i32 : i32
    %1 = arith.extui %0 : i1 to i32
    %c0_i32_0 = arith.constant 0 : i32
    %2 = arith.cmpi ne, %1, %c0_i32_0 : i32
    scf.if %2 {
      %c0_24 = arith.constant 0 : index
      %c0_25 = arith.constant 0 : index
      %c0_26 = arith.constant 0 : index
      %34 = vector.load %arg3[%c0_24, %c0_25, %c0_26] : memref<1x128x128xf32, #tpu.memory_space<vmem>>, vector<1x128x128xf32>
      %35 = vector.shape_cast %34 : vector<1x128x128xf32> to vector<128x128xf32>
      %c0_27 = arith.constant 0 : index
      %c0_28 = arith.constant 0 : index
      %36 = vector.load %arg6[%c0_27, %c0_28] : memref<128x128xf32, #tpu.memory_space<vmem>>, vector<128x128xf32>
      %cst_29 = arith.constant dense<0.000000e+00> : vector<128x128xf32>
      %37 = tpu.matmul %36, %35, %cst_29 {dimension_numbers = #tpu.dot_dimension_numbers<[1], [0], [0], [1], [0, 0, 1, 1], [], []>} : vector<128x128xf32>, vector<128x128xf32>, vector<128x128xf32> -> vector<128x128xf32>
      %c0_30 = arith.constant 0 : index
      %c0_31 = arith.constant 0 : index
      %38 = vector.load %arg7[%c0_30, %c0_31] : memref<128x1xf32, #tpu.memory_space<vmem>>, vector<128x1xf32>
      %39 = vector.broadcast %38 : vector<128x1xf32> to vector<128x128xf32>
      %40 = arith.addf %37, %39 : vector<128x128xf32>
      %41 = tpu.transpose %40, [1, 0] : vector<128x128xf32> -> vector<128x128xf32>
      %c0_32 = arith.constant 0 : index
      %c0_33 = arith.constant 0 : index
      %42 = vector.load %arg11[%c0_32, %c0_33] : memref<128x128xf32, #tpu.memory_space<vmem>>, vector<128x128xf32>
      tpu.vector_store %arg11[%c0_32, %c0_33], %41 {strides = array<i32>} : memref<128x128xf32, #tpu.memory_space<vmem>>, vector<128x128xf32>,
      %cst_34 = arith.constant 0xFF800000 : f32
      %43 = vector.broadcast %cst_34 : f32 to vector<128x1xf32>
      %c0_35 = arith.constant 0 : index
      %c0_36 = arith.constant 0 : index
      %44 = vector.load %arg12[%c0_35, %c0_36] : memref<128x1xf32, #tpu.memory_space<vmem>>, vector<128x1xf32>
      tpu.vector_store %arg12[%c0_35, %c0_36], %43 {strides = array<i32>} : memref<128x1xf32, #tpu.memory_space<vmem>>, vector<128x1xf32>,
      %cst_37 = arith.constant 0.000000e+00 : f32
      %45 = vector.broadcast %cst_37 : f32 to vector<128x1xf32>
      %c0_38 = arith.constant 0 : index
      %c0_39 = arith.constant 0 : index
      %46 = vector.load %arg13[%c0_38, %c0_39] : memref<128x1xf32, #tpu.memory_space<vmem>>, vector<128x1xf32>
      tpu.vector_store %arg13[%c0_38, %c0_39], %45 {strides = array<i32>} : memref<128x1xf32, #tpu.memory_space<vmem>>, vector<128x1xf32>,
      %cst_40 = arith.constant 0.000000e+00 : f32
      %47 = vector.broadcast %cst_40 : f32 to vector<128x128xf32>
      %c0_41 = arith.constant 0 : index
      %c0_42 = arith.constant 0 : index
      %48 = vector.load %arg14[%c0_41, %c0_42] : memref<128x128xf32, #tpu.memory_space<vmem>>, vector<128x128xf32>
      tpu.vector_store %arg14[%c0_41, %c0_42], %47 {strides = array<i32>} : memref<128x128xf32, #tpu.memory_space<vmem>>, vector<128x128xf32>,
    } else {
    }
    %c0 = arith.constant 0 : index
    %c0_1 = arith.constant 0 : index
    %c0_2 = arith.constant 0 : index
    %3 = vector.load %arg4[%c0, %c0_1, %c0_2] : memref<1x128x128xf32, #tpu.memory_space<vmem>>, vector<1x128x128xf32>
    %4 = vector.shape_cast %3 : vector<1x128x128xf32> to vector<128x128xf32>
    %c0_3 = arith.constant 0 : index
    %c0_4 = arith.constant 0 : index
    %c0_5 = arith.constant 0 : index
    %5 = vector.load %arg5[%c0_3, %c0_4, %c0_5] : memref<1x128x128xf32, #tpu.memory_space<vmem>>, vector<1x128x128xf32>
    %6 = vector.shape_cast %5 : vector<1x128x128xf32> to vector<128x128xf32>
    %c0_6 = arith.constant 0 : index
    %c0_7 = arith.constant 0 : index
    %7 = vector.load %arg11[%c0_6, %c0_7] : memref<128x128xf32, #tpu.memory_space<vmem>>, vector<128x128xf32>
    %cst = arith.constant dense<0.000000e+00> : vector<128x128xf32>
    %8 = tpu.matmul %7, %4, %cst {dimension_numbers = #tpu.dot_dimension_numbers<[1], [0], [0], [1], [0, 0, 1, 1], [], []>} : vector<128x128xf32>, vector<128x128xf32>, vector<128x128xf32> -> vector<128x128xf32>
    %c0_8 = arith.constant 0 : index
    %c0_9 = arith.constant 0 : index
    %9 = vector.load %arg12[%c0_8, %c0_9] : memref<128x1xf32, #tpu.memory_space<vmem>>, vector<128x1xf32>
    %cst_10 = arith.constant dense<0xFF800000> : vector<128xf32>
    %10 = vector.multi_reduction <maximumf>, %8, %cst_10 [1] : vector<128x128xf32> to vector<128xf32>
    %11 = vector.shape_cast %10 : vector<128xf32> to vector<128x1xf32>
    %12 = arith.maximumf %9, %11 : vector<128x1xf32>
    %13 = arith.subf %9, %12 : vector<128x1xf32>
    %14 = math.exp %13 : vector<128x1xf32>
    %15 = vector.broadcast %12 : vector<128x1xf32> to vector<128x128xf32>
    %16 = arith.subf %8, %15 : vector<128x128xf32>
    %17 = math.exp %16 : vector<128x128xf32>
    %c0_11 = arith.constant 0 : index
    %c0_12 = arith.constant 0 : index
    %18 = vector.load %arg13[%c0_11, %c0_12] : memref<128x1xf32, #tpu.memory_space<vmem>>, vector<128x1xf32>
    %19 = arith.mulf %14, %18 : vector<128x1xf32>
    %cst_13 = arith.constant dense<0.000000e+00> : vector<128xf32>
    %20 = vector.multi_reduction <add>, %17, %cst_13 [1] : vector<128x128xf32> to vector<128xf32>
    %21 = vector.shape_cast %20 : vector<128xf32> to vector<128x1xf32>
    %22 = arith.addf %19, %21 : vector<128x1xf32>
    %c0_14 = arith.constant 0 : index
    %c0_15 = arith.constant 0 : index
    %23 = vector.load %arg13[%c0_14, %c0_15] : memref<128x1xf32, #tpu.memory_space<vmem>>, vector<128x1xf32>
    tpu.vector_store %arg13[%c0_14, %c0_15], %22 {strides = array<i32>} : memref<128x1xf32, #tpu.memory_space<vmem>>, vector<128x1xf32>,
    %c0_16 = arith.constant 0 : index
    %c0_17 = arith.constant 0 : index
    %24 = vector.load %arg14[%c0_16, %c0_17] : memref<128x128xf32, #tpu.memory_space<vmem>>, vector<128x128xf32>
    %25 = vector.broadcast %14 : vector<128x1xf32> to vector<128x128xf32>
    %26 = arith.mulf %25, %24 : vector<128x128xf32>
    %cst_18 = arith.constant dense<0.000000e+00> : vector<128x128xf32>
    %27 = tpu.matmul %17, %6, %cst_18 {dimension_numbers = #tpu.dot_dimension_numbers<[1], [0], [0], [1], [0, 0, 1, 1], [], []>} : vector<128x128xf32>, vector<128x128xf32>, vector<128x128xf32> -> vector<128x128xf32>
    %28 = arith.addf %26, %27 : vector<128x128xf32>
    %c0_19 = arith.constant 0 : index
    %c0_20 = arith.constant 0 : index
    %29 = vector.load %arg14[%c0_19, %c0_20] : memref<128x128xf32, #tpu.memory_space<vmem>>, vector<128x128xf32>
    tpu.vector_store %arg14[%c0_19, %c0_20], %28 {strides = array<i32>} : memref<128x128xf32, #tpu.memory_space<vmem>>, vector<128x128xf32>,
    %c0_21 = arith.constant 0 : index
    %c0_22 = arith.constant 0 : index
    %30 = vector.load %arg12[%c0_21, %c0_22] : memref<128x1xf32, #tpu.memory_space<vmem>>, vector<128x1xf32>
    tpu.vector_store %arg12[%c0_21, %c0_22], %12 {strides = array<i32>} : memref<128x1xf32, #tpu.memory_space<vmem>>, vector<128x1xf32>,
    %c1_i32 = arith.constant 1 : i32
    %31 = arith.cmpi eq, %arg2, %c1_i32 : i32
    %32 = arith.extui %31 : i1 to i32
    %c0_i32_23 = arith.constant 0 : i32
    %33 = arith.cmpi ne, %32, %c0_i32_23 : i32
    scf.if %33 {
      %c0_24 = arith.constant 0 : index
      %c0_25 = arith.constant 0 : index
      %34 = vector.load %arg13[%c0_24, %c0_25] : memref<128x1xf32, #tpu.memory_space<vmem>>, vector<128x1xf32>
      %35 = tpu.reciprocal %34 {approx = true} : vector<128x1xf32> -> vector<128x1xf32>
      %36 = arith.mulf %34, %35 : vector<128x1xf32>
      %cst_26 = arith.constant 2.000000e+00 : f32
      %37 = vector.broadcast %cst_26 : f32 to vector<128x1xf32>
      %38 = arith.subf %37, %36 : vector<128x1xf32>
      %39 = arith.mulf %35, %38 : vector<128x1xf32>
      %c0_27 = arith.constant 0 : index
      %c0_28 = arith.constant 0 : index
      %40 = vector.load %arg14[%c0_27, %c0_28] : memref<128x128xf32, #tpu.memory_space<vmem>>, vector<128x128xf32>
      %41 = vector.broadcast %39 : vector<128x1xf32> to vector<128x128xf32>
      %42 = arith.mulf %40, %41 : vector<128x128xf32>
      %c0_29 = arith.constant 0 : index
      %c0_30 = arith.constant 0 : index
      %43 = vector.load %arg8[%c0_29, %c0_30] : memref<128x128xf32, #tpu.memory_space<vmem>>, vector<128x128xf32>
      %cst_31 = arith.constant dense<0.000000e+00> : vector<128x128xf32>
      %44 = tpu.matmul %43, %42, %cst_31 {dimension_numbers = #tpu.dot_dimension_numbers<[1], [1], [0], [0], [0, 0, 1, 0], [], []>} : vector<128x128xf32>, vector<128x128xf32>, vector<128x128xf32> -> vector<128x128xf32>
      %c0_32 = arith.constant 0 : index
      %c0_33 = arith.constant 0 : index
      %45 = vector.load %arg9[%c0_32, %c0_33] : memref<128x1xf32, #tpu.memory_space<vmem>>, vector<128x1xf32>
      %46 = vector.broadcast %45 : vector<128x1xf32> to vector<128x128xf32>
      %47 = arith.addf %44, %46 : vector<128x128xf32>
      %c0_34 = arith.constant 0 : index
      %c0_35 = arith.constant 0 : index
      %c0_36 = arith.constant 0 : index
      %48 = vector.load %arg3[%c0_34, %c0_35, %c0_36] : memref<1x128x128xf32, #tpu.memory_space<vmem>>, vector<1x128x128xf32>
      %49 = vector.shape_cast %48 : vector<1x128x128xf32> to vector<128x128xf32>
      %50 = arith.addf %47, %49 : vector<128x128xf32>
      %c0_37 = arith.constant 0 : index
      %c0_38 = arith.constant 0 : index
      %c0_39 = arith.constant 0 : index
      %51 = vector.load %arg10[%c0_37, %c0_38, %c0_39] : memref<1x128x128xf32, #tpu.memory_space<vmem>>, vector<1x128x128xf32>
      %52 = vector.shape_cast %51 : vector<1x128x128xf32> to vector<128x128xf32>
      %53 = vector.shape_cast %50 : vector<128x128xf32> to vector<1x128x128xf32>
      tpu.vector_store %arg10[%c0_37, %c0_38, %c0_39], %53 {strides = array<i32>} : memref<1x128x128xf32, #tpu.memory_space<vmem>>, vector<1x128x128xf32>,
    } else {
    }
    return
  }
  func.func @transform_0(%arg0: i32, %arg1: i32, %arg2: i32) -> (i32, i32, i32) {
    %c0_i32 = arith.constant 0 : i32
    %c0_i32_0 = arith.constant 0 : i32
    return %arg0, %c0_i32, %arg1 : i32, i32, i32
  }
  func.func @transform_1(%arg0: i32, %arg1: i32, %arg2: i32) -> (i32, i32, i32) {
    %c0_i32 = arith.constant 0 : i32
    %c0_i32_0 = arith.constant 0 : i32
    return %arg0, %c0_i32, %arg2 : i32, i32, i32
  }
  func.func @transform_2(%arg0: i32, %arg1: i32, %arg2: i32) -> (i32, i32, i32) {
    %c0_i32 = arith.constant 0 : i32
    %c0_i32_0 = arith.constant 0 : i32
    return %arg0, %arg2, %c0_i32 : i32, i32, i32
  }
  func.func @transform_3(%arg0: i32, %arg1: i32, %arg2: i32) -> (i32, i32) {
    %c0_i32 = arith.constant 0 : i32
    %c0_i32_0 = arith.constant 0 : i32
    %c0_i32_1 = arith.constant 0 : i32
    return %c0_i32, %c0_i32_0 : i32, i32
  }
  func.func @transform_4(%arg0: i32, %arg1: i32, %arg2: i32) -> (i32, i32) {
    %c0_i32 = arith.constant 0 : i32
    %c0_i32_0 = arith.constant 0 : i32
    %c0_i32_1 = arith.constant 0 : i32
    return %c0_i32, %c0_i32_0 : i32, i32
  }
  func.func @transform_5(%arg0: i32, %arg1: i32, %arg2: i32) -> (i32, i32) {
    %c0_i32 = arith.constant 0 : i32
    %c0_i32_0 = arith.constant 0 : i32
    %c0_i32_1 = arith.constant 0 : i32
    return %c0_i32, %c0_i32_0 : i32, i32
  }
  func.func @transform_6(%arg0: i32, %arg1: i32, %arg2: i32) -> (i32, i32) {
    %c0_i32 = arith.constant 0 : i32
    %c0_i32_0 = arith.constant 0 : i32
    %c0_i32_1 = arith.constant 0 : i32
    return %c0_i32, %c0_i32_0 : i32, i32
  }
  func.func @transform_7(%arg0: i32, %arg1: i32, %arg2: i32) -> (i32, i32, i32) {
    %c0_i32 = arith.constant 0 : i32
    %c0_i32_0 = arith.constant 0 : i32
    return %arg0, %c0_i32, %arg1 : i32, i32, i32
  }
}

</mosaic_0001>

<llo_original>
// kernel: tpu_custom_call.1
$region0: #{tpu_custom_call.1}
  #allocation0 [shape = 'u32[]', space=smem, size = 0x4, offset = 0x4, fixed_abs, tag = 'smem constant byte address 0x4 - core index']
  #allocation1 [shape = 'u32[144,128]{1,0:T(1,128)}', space=vmem, size = 0x12000, scoped, tag = 'internal scratch']
  #allocation2 [shape = 'f32[128,128]{1,0:T(8,128)}', space=vmem, size = 0x10000, scoped, tag = 'scratch operand']
  #allocation3 [shape = 'f32[128,1]{1,0:T(8,128)}', space=vmem, size = 0x10000, scoped, tag = 'scratch operand']
  #allocation4 [shape = 'f32[128,1]{1,0:T(8,128)}', space=vmem, size = 0x10000, scoped, tag = 'scratch operand']
  #allocation5 [shape = 'f32[128,128]{1,0:T(8,128)}', space=vmem, size = 0x10000, scoped, tag = 'scratch operand']
  %s0 = inlined_call_operand.hbm [shape: f32[2,128,256], index: 0, kind: input, shape index: {}]
  %s1 = inlined_call_operand.hbm [shape: f32[2,128,256], index: 1, kind: input, shape index: {}]
  %s2 = inlined_call_operand.hbm [shape: f32[2,256,128], index: 2, kind: input, shape index: {}]
  %s3 = inlined_call_operand.vmem [shape: f32[128,128], index: 3, kind: input, shape index: {}]
  %s4 = inlined_call_operand.vmem [shape: f32[128,1], index: 4, kind: input, shape index: {}]
  %s5 = inlined_call_operand.vmem [shape: f32[128,128], index: 5, kind: input, shape index: {}]
  %s6 = inlined_call_operand.vmem [shape: f32[128,1], index: 6, kind: input, shape index: {}]
  %s7 = inlined_call_operand.hbm [shape: f32[2,128,256], index: 7, kind: output, shape index: {}]
  %s8 = sld [smem:[#allocation0]]
  $region81: #{tpu_custom_call.1} parent=0
    _
  %s10 = ssub.s32 1, %s8
  %s11 = scalar_select 0, %s10, %s8
  $region1: #{tpu_custom_call.1} parent=0
    #allocation6 [shape = 'u8[131072]{0}', space=vmem, size = 0x20000, scoped, tag = 'input window, operand 0']
    #allocation7 [shape = 's32[2]{0}', space=sflag, size = 0x8, scoped, tag = 'scoped memory for tpu_custom_call.1']
    #allocation8 [shape = 's32[2]{0}', space=sflag, size = 0x8, scoped, tag = 'scoped memory for tpu_custom_call.1']
    #allocation9 [shape = 'u8[131072]{0}', space=vmem, size = 0x20000, scoped, tag = 'input window, operand 1']
    #allocation10 [shape = 's32[2]{0}', space=sflag, size = 0x8, scoped, tag = 'scoped memory for tpu_custom_call.1']
    #allocation11 [shape = 'u8[131072]{0}', space=vmem, size = 0x20000, scoped, tag = 'input window, operand 2']
    #allocation12 [shape = 'u8[131072]{0}', space=vmem, size = 0x20000, scoped, tag = 'output window, operand 0']
    %12 = vsyncpa [#allocation7], 0
    %s13 = scalar_lea.sflag [#allocation7], 1
    %14 = vsyncpa %s13, 0
    %15 = vsyncpa [#allocation10], 0
    %s16 = scalar_lea.sflag [#allocation10], 1
    %17 = vsyncpa %s16, 0
    %18 = vsyncpa [#allocation8], 0
    %s19 = scalar_lea.sflag [#allocation8], 1
    %20 = vsyncpa %s19, 0
    loop: start=0, step=1, limit=10
    $region2: #{tpu_custom_call.1} parent=1 // loop_pre_header
      _
    $region3: #{tpu_custom_call.1} parent=1 // loop_header
      %s22 = sphi 0, %s26
      %p23 = scmp.ge.s32.totalorder %s22, 10
      %s29 = sphi 0, %s48
      %s30 = sphi 0, %s44
      %s31 = sphi 0, %s40
      %s32 = sphi 0, %s29
      %s33 = sphi 0, %s30
      %s34 = sphi 0, %s31
      %s35 = sphi 0, %s32
      %s36 = sphi 0, %s33
      %s37 = sphi 0, %s34
      %s53 = sphi 0, %s55
      %s56 = sphi 0, %s53
      %s57 = sphi 0, %s56
      %s73 = sphi 0, %s57
      %s81 = sphi 0, %s83
      %s84 = sphi 0, %s81
      %s85 = sphi 0, %s84
      %s101 = sphi 0, %s85
      %s109 = sphi 0, %s111
      %s112 = sphi 0, %s109
      %s113 = sphi 0, %s112
      %s129 = sphi 0, %s113
      %s133 = sphi 0, %s133
      %s135 = sphi 0, %s133
      %s136 = sphi 0, %s135
      %s150 = sphi 0, %s136
      %s154 = sphi 0, %s154
      %s156 = sphi 0, %s154
      %s157 = sphi 0, %s156
      %s171 = sphi 0, %s157
      %s175 = sphi 0, %s175
      %s177 = sphi 0, %s175
      %s178 = sphi 0, %s177
      %s192 = sphi 0, %s178
      %s196 = sphi 0, %s196
      %s198 = sphi 0, %s196
      %s199 = sphi 0, %s198
      %s213 = sphi 0, %s199
      %s221 = sphi 0, %s223
      %s224 = sphi 0, %s221
      %s225 = sphi 0, %s224
      %s241 = sphi 0, %s225
    $region4: #{tpu_custom_call.1} parent=1 // loop_header_branch
      %25 = sbr.rel (%p23) target = $region8
    $region5: #{tpu_custom_call.1} parent=1 // loop_body
      %s27 = ssub.s32 %s22, 1
      %s28 = ssub.s32 %s22, 2
      %s38 = sadd.s32 1, %s31
      %p39 = scmp.ge.s32.totalorder %s38, 2
      %s40 = scalar_select %p39, 0, %s38
      %s41 = sadd.s32 1, %s30
      %s42 = scalar_select %p39, %s41, %s30
      %p43 = scmp.ge.s32.totalorder %s42, 2
      %s44 = scalar_select %p43, 0, %s42
      %s45 = sadd.s32 1, %s29
      %s46 = scalar_select %p43, %s45, %s29
      %p47 = scmp.ge.s32.totalorder %s46, 2
      %s48 = scalar_select %p47, 0, %s46
      %s49 = ssub.s32 %s29, %s48
      %s50 = ssub.s32 %s30, %s44
      %s51 = sor.u32 %s49, %s50
      %p52 = scmp.eq.s32.totalorder %s51, 0
      %s54 = sadd.s32 %s53, 1
      %s55 = scalar_select %p52, %s53, %s54
      %p58 = pneg %p52
      %p59 = scmp.eq.s32.totalorder %s22, 7
      %p60 = por %p58, %p59
      %p61 = scmp.ne.s32.totalorder %s53, %s56
      %p62 = scmp.eq.s32.totalorder %s22, 0
      %p63 = por %p61, %p62
      %p64 = scmp.ne.s32.totalorder %s53, %s56
      %p65 = scmp.eq.s32.totalorder %s27, 7
      %p66 = por %p64, %p65
      %p67 = scmp.ne.s32.totalorder %s56, %s57
      %p68 = scmp.eq.s32.totalorder %s27, 0
      %p69 = por %p67, %p68
      %p70 = scmp.ne.s32.totalorder %s56, %s57
      %p71 = scmp.eq.s32.totalorder %s28, 7
      %p72 = por %p70, %p71
      %p74 = scmp.ne.s32.totalorder %s57, %s73
      %p75 = scmp.eq.s32.totalorder %s28, 0
      %p76 = por %p74, %p75
      %s77 = ssub.s32 %s29, %s48
      %s78 = ssub.s32 %s31, %s40
      %s79 = sor.u32 %s77, %s78
      %p80 = scmp.eq.s32.totalorder %s79, 0
      %s82 = sadd.s32 %s81, 1
      %s83 = scalar_select %p80, %s81, %s82
      %p86 = pneg %p80
      %p87 = scmp.eq.s32.totalorder %s22, 7
      %p88 = por %p86, %p87
      %p89 = scmp.ne.s32.totalorder %s81, %s84
      %p90 = scmp.eq.s32.totalorder %s22, 0
      %p91 = por %p89, %p90
      %p92 = scmp.ne.s32.totalorder %s81, %s84
      %p93 = scmp.eq.s32.totalorder %s27, 7
      %p94 = por %p92, %p93
      %p95 = scmp.ne.s32.totalorder %s84, %s85
      %p96 = scmp.eq.s32.totalorder %s27, 0
      %p97 = por %p95, %p96
      %p98 = scmp.ne.s32.totalorder %s84, %s85
      %p99 = scmp.eq.s32.totalorder %s28, 7
      %p100 = por %p98, %p99
      %p102 = scmp.ne.s32.totalorder %s85, %s101
      %p103 = scmp.eq.s32.totalorder %s28, 0
      %p104 = por %p102, %p103
      %s105 = ssub.s32 %s29, %s48
      %s106 = ssub.s32 %s31, %s40
      %s107 = sor.u32 %s105, %s106
      %p108 = scmp.eq.s32.totalorder %s107, 0
      %s110 = sadd.s32 %s109, 1
      %s111 = scalar_select %p108, %s109, %s110
      %p114 = pneg %p108
      %p115 = scmp.eq.s32.totalorder %s22, 7
      %p116 = por %p114, %p115
      %p117 = scmp.ne.s32.totalorder %s109, %s112
      %p118 = scmp.eq.s32.totalorder %s22, 0
      %p119 = por %p117, %p118
      %p120 = scmp.ne.s32.totalorder %s109, %s112
      %p121 = scmp.eq.s32.totalorder %s27, 7
      %p122 = por %p120, %p121
      %p123 = scmp.ne.s32.totalorder %s112, %s113
      %p124 = scmp.eq.s32.totalorder %s27, 0
      %p125 = por %p123, %p124
      %p126 = scmp.ne.s32.totalorder %s112, %s113
      %p127 = scmp.eq.s32.totalorder %s28, 7
      %p128 = por %p126, %p127
      %p130 = scmp.ne.s32.totalorder %s113, %s129
      %p131 = scmp.eq.s32.totalorder %s28, 0
      %p132 = por %p130, %p131
      %s134 = sadd.s32 %s133, 1
      %p137 = scmp.eq.s32.totalorder %s22, 7
      %p138 = scmp.ne.s32.totalorder %s133, %s135
      %p139 = scmp.eq.s32.totalorder %s22, 0
      %p140 = por %p138, %p139
      %p141 = scmp.ne.s32.totalorder %s133, %s135
      %p142 = scmp.eq.s32.totalorder %s27, 7
      %p143 = por %p141, %p142
      %p144 = scmp.ne.s32.totalorder %s135, %s136
      %p145 = scmp.eq.s32.totalorder %s27, 0
      %p146 = por %p144, %p145
      %p147 = scmp.ne.s32.totalorder %s135, %s136
      %p148 = scmp.eq.s32.totalorder %s28, 7
      %p149 = por %p147, %p148
      %p151 = scmp.ne.s32.totalorder %s136, %s150
      %p152 = scmp.eq.s32.totalorder %s28, 0
      %p153 = por %p151, %p152
      %s155 = sadd.s32 %s154, 1
      %p158 = scmp.eq.s32.totalorder %s22, 7
      %p159 = scmp.ne.s32.totalorder %s154, %s156
      %p160 = scmp.eq.s32.totalorder %s22, 0
      %p161 = por %p159, %p160
      %p162 = scmp.ne.s32.totalorder %s154, %s156
      %p163 = scmp.eq.s32.totalorder %s27, 7
      %p164 = por %p162, %p163
      %p165 = scmp.ne.s32.totalorder %s156, %s157
      %p166 = scmp.eq.s32.totalorder %s27, 0
      %p167 = por %p165, %p166
      %p168 = scmp.ne.s32.totalorder %s156, %s157
      %p169 = scmp.eq.s32.totalorder %s28, 7
      %p170 = por %p168, %p169
      %p172 = scmp.ne.s32.totalorder %s157, %s171
      %p173 = scmp.eq.s32.totalorder %s28, 0
      %p174 = por %p172, %p173
      %s176 = sadd.s32 %s175, 1
      %p179 = scmp.eq.s32.totalorder %s22, 7
      %p180 = scmp.ne.s32.totalorder %s175, %s177
      %p181 = scmp.eq.s32.totalorder %s22, 0
      %p182 = por %p180, %p181
      %p183 = scmp.ne.s32.totalorder %s175, %s177
      %p184 = scmp.eq.s32.totalorder %s27, 7
      %p185 = por %p183, %p184
      %p186 = scmp.ne.s32.totalorder %s177, %s178
      %p187 = scmp.eq.s32.totalorder %s27, 0
      %p188 = por %p186, %p187
      %p189 = scmp.ne.s32.totalorder %s177, %s178
      %p190 = scmp.eq.s32.totalorder %s28, 7
      %p191 = por %p189, %p190
      %p193 = scmp.ne.s32.totalorder %s178, %s192
      %p194 = scmp.eq.s32.totalorder %s28, 0
      %p195 = por %p193, %p194
      %s197 = sadd.s32 %s196, 1
      %p200 = scmp.eq.s32.totalorder %s22, 7
      %p201 = scmp.ne.s32.totalorder %s196, %s198
      %p202 = scmp.eq.s32.totalorder %s22, 0
      %p203 = por %p201, %p202
      %p204 = scmp.ne.s32.totalorder %s196, %s198
      %p205 = scmp.eq.s32.totalorder %s27, 7
      %p206 = por %p204, %p205
      %p207 = scmp.ne.s32.totalorder %s198, %s199
      %p208 = scmp.eq.s32.totalorder %s27, 0
      %p209 = por %p207, %p208
      %p210 = scmp.ne.s32.totalorder %s198, %s199
      %p211 = scmp.eq.s32.totalorder %s28, 7
      %p212 = por %p210, %p211
      %p214 = scmp.ne.s32.totalorder %s199, %s213
      %p215 = scmp.eq.s32.totalorder %s28, 0
      %p216 = por %p214, %p215
      %s217 = ssub.s32 %s29, %s48
      %s218 = ssub.s32 %s30, %s44
      %s219 = sor.u32 %s217, %s218
      %p220 = scmp.eq.s32.totalorder %s219, 0
      %s222 = sadd.s32 %s221, 1
      %s223 = scalar_select %p220, %s221, %s222
      %p226 = pneg %p220
      %p227 = scmp.eq.s32.totalorder %s22, 7
      %p228 = por %p226, %p227
      %p229 = scmp.ne.s32.totalorder %s221, %s224
      %p230 = scmp.eq.s32.totalorder %s22, 0
      %p231 = por %p229, %p230
      %p232 = scmp.ne.s32.totalorder %s221, %s224
      %p233 = scmp.eq.s32.totalorder %s27, 7
      %p234 = por %p232, %p233
      %p235 = scmp.ne.s32.totalorder %s224, %s225
      %p236 = scmp.eq.s32.totalorder %s27, 0
      %p237 = por %p235, %p236
      %p238 = scmp.ne.s32.totalorder %s224, %s225
      %p239 = scmp.eq.s32.totalorder %s28, 7
      %p240 = por %p238, %p239
      %p242 = scmp.ne.s32.totalorder %s225, %s241
      %p243 = scmp.eq.s32.totalorder %s28, 0
      %p244 = por %p242, %p243
      %p245 = scmp.le.s32.totalorder 1, %s22
      %p246 = scmp.lt.s32.totalorder %s22, 9
      %p247 = pnand %p245, %p246
      %p248 = pneg %p247
      // Predicated region
      $region9: #{tpu_custom_call.1} parent=5 // pred_check
        _
      $region10: #{tpu_custom_call.1} parent=5 // pred_check_branch
        %250 = sbr.rel (%p247) target = $region12
      $region11: #{tpu_custom_call.1} parent=5 // pred_region
        %s251 = ssub.s32 %s22, 1
        // Predicated region
        $region13: #{tpu_custom_call.1} parent=11 // pred_check
          %p252 = pneg %p146
        $region14: #{tpu_custom_call.1} parent=11 // pred_check_branch
          %254 = sbr.rel (%p252) target = $region16
        $region15: #{tpu_custom_call.1} parent=11 // pred_region
          _
        $region16: #{tpu_custom_call.1} parent=11 // pred_fallthru
          _
        // Predicated region
        $region17: #{tpu_custom_call.1} parent=11 // pred_check
          %p255 = pneg %p167
        $region18: #{tpu_custom_call.1} parent=11 // pred_check_branch
          %257 = sbr.rel (%p255) target = $region20
        $region19: #{tpu_custom_call.1} parent=11 // pred_region
          _
        $region20: #{tpu_custom_call.1} parent=11 // pred_fallthru
          _
        // Predicated region
        $region21: #{tpu_custom_call.1} parent=11 // pred_check
          %p258 = pneg %p188
        $region22: #{tpu_custom_call.1} parent=11 // pred_check_branch
          %260 = sbr.rel (%p258) target = $region24
        $region23: #{tpu_custom_call.1} parent=11 // pred_region
          _
        $region24: #{tpu_custom_call.1} parent=11 // pred_fallthru
          _
        // Predicated region
        $region25: #{tpu_custom_call.1} parent=11 // pred_check
          %p261 = pneg %p209
        $region26: #{tpu_custom_call.1} parent=11 // pred_check_branch
          %263 = sbr.rel (%p261) target = $region28
        $region27: #{tpu_custom_call.1} parent=11 // pred_region
          _
        $region28: #{tpu_custom_call.1} parent=11 // pred_fallthru
          _
      $region12: #{tpu_custom_call.1} parent=5 // pred_fallthru
        _
      %p264 = scmp.lt.s32.totalorder %s22, 8
      // Predicated region
      $region29: #{tpu_custom_call.1} parent=5 // pred_check
        %p265 = pneg %p264
      $region30: #{tpu_custom_call.1} parent=5 // pred_check_branch
        %267 = sbr.rel (%p265) target = $region32
      $region31: #{tpu_custom_call.1} parent=5 // pred_region
        // Predicated region
        $region33: #{tpu_custom_call.1} parent=31 // pred_check
          %p268 = pneg %p63
        $region34: #{tpu_custom_call.1} parent=31 // pred_check_branch
          %270 = sbr.rel (%p268) target = $region36
        $region35: #{tpu_custom_call.1} parent=31 // pred_region
          %s271 = sand.u32 %s53, 1
          %s272 = scalar_lea.sflag [#allocation7], %s271
          %s273 = sand.u32 %s53, 1
          %s274 = smul.addr %s273, 128
          %s275 = scalar_lea.vmem [#allocation6], %s274
          %s277 = ssub.s32 2048, 2048
          %278 = vsyncadd %s272, %s277
          %s279 = smul.addr %s29, 32
          %s280 = sadd.s32 %s30, %s279
          %s281 = smul.addr %s280, 128
          %s282 = scalar_lea.hbm %s0, %s281
          %s283 = sshll.u32 %s275, 4
          %s284 = int_to_ptr.vmem [resolvable:$true] %s283
          %289 = dma.hbm_to_vmem [thread:$0]  %s282, 2048, %s284, %s272, 256, 128, 8
        $region36: #{tpu_custom_call.1} parent=31 // pred_fallthru
          _
        // Predicated region
        $region37: #{tpu_custom_call.1} parent=31 // pred_check
          %p290 = pneg %p91
        $region38: #{tpu_custom_call.1} parent=31 // pred_check_branch
          %292 = sbr.rel (%p290) target = $region40
        $region39: #{tpu_custom_call.1} parent=31 // pred_region
          %s293 = sand.u32 %s22, 1
          %s294 = scalar_lea.sflag [#allocation10], %s293
          %s295 = sand.u32 %s81, 1
          %s296 = smul.addr %s295, 128
          %s297 = scalar_lea.vmem [#allocation9], %s296
          %s299 = ssub.s32 2048, 2048
          %300 = vsyncadd %s294, %s299
          %s301 = smul.addr %s29, 32
          %s302 = sadd.s32 %s31, %s301
          %s303 = smul.addr %s302, 128
          %s304 = scalar_lea.hbm %s1, %s303
          %s305 = sshll.u32 %s297, 4
          %s306 = int_to_ptr.vmem [resolvable:$true] %s305
          %311 = dma.hbm_to_vmem [thread:$0]  %s304, 2048, %s306, %s294, 256, 128, 8
        $region40: #{tpu_custom_call.1} parent=31 // pred_fallthru
          _
        // Predicated region
        $region41: #{tpu_custom_call.1} parent=31 // pred_check
          %p312 = pneg %p119
        $region42: #{tpu_custom_call.1} parent=31 // pred_check_branch
          %314 = sbr.rel (%p312) target = $region44
        $region43: #{tpu_custom_call.1} parent=31 // pred_region
          %s315 = sand.u32 %s22, 1
          %s316 = scalar_lea.sflag [#allocation10], %s315
          %s317 = sand.u32 %s109, 1
          %s318 = smul.addr %s317, 128
          %s319 = scalar_lea.vmem [#allocation11], %s318
          %s320 = smul.u32 16, %s31
          %s322 = ssub.s32 2048, 2048
          %323 = vsyncadd %s316, %s322
          %s324 = smul.addr %s29, 32
          %s325 = sadd.s32 %s320, %s324
          %s326 = smul.addr %s325, 128
          %s327 = scalar_lea.hbm %s2, %s326
          %s328 = sshll.u32 %s319, 4
          %s329 = int_to_ptr.vmem [resolvable:$true] %s328
          %334 = dma.hbm_to_vmem [thread:$0]  %s327, 2048, %s329, %s316, 128, 128, 8
        $region44: #{tpu_custom_call.1} parent=31 // pred_fallthru
          _
      $region32: #{tpu_custom_call.1} parent=5 // pred_fallthru
        _
      %p335 = scmp.le.s32.totalorder 1, %s22
      %p336 = scmp.lt.s32.totalorder %s22, 9
      %p337 = pnand %p335, %p336
      %p338 = pneg %p337
      // Predicated region
      $region45: #{tpu_custom_call.1} parent=5 // pred_check
        _
      $region46: #{tpu_custom_call.1} parent=5 // pred_check_branch
        %340 = sbr.rel (%p337) target = $region48
      $region47: #{tpu_custom_call.1} parent=5 // pred_region
        %s341 = ssub.s32 %s22, 1
        %s342 = sand.u32 %s56, 1
        %s343 = scalar_lea.sflag [#allocation7], %s342
        %s344 = sand.u32 %s56, 1
        %s345 = smul.addr %s344, 128
        %s346 = scalar_lea.vmem [#allocation6], %s345
        // Predicated region
        $region49: #{tpu_custom_call.1} parent=47 // pred_check
          %p347 = pneg %p69
        $region50: #{tpu_custom_call.1} parent=47 // pred_check_branch
          %349 = sbr.rel (%p347) target = $region52
        $region51: #{tpu_custom_call.1} parent=47 // pred_region
          %350 = dma.done %s343, 2048
        $region52: #{tpu_custom_call.1} parent=47 // pred_fallthru
          _
        %s351 = sand.u32 %s27, 1
        %s352 = scalar_lea.sflag [#allocation10], %s351
        %s353 = sand.u32 %s84, 1
        %s354 = smul.addr %s353, 128
        %s355 = scalar_lea.vmem [#allocation9], %s354
        // Predicated region
        $region53: #{tpu_custom_call.1} parent=47 // pred_check
          %p356 = pneg %p97
        $region54: #{tpu_custom_call.1} parent=47 // pred_check_branch
          %358 = sbr.rel (%p356) target = $region56
        $region55: #{tpu_custom_call.1} parent=47 // pred_region
          %359 = dma.done %s352, 2048
        $region56: #{tpu_custom_call.1} parent=47 // pred_fallthru
          _
        %s360 = sand.u32 %s27, 1
        %s361 = scalar_lea.sflag [#allocation10], %s360
        %s362 = sand.u32 %s112, 1
        %s363 = smul.addr %s362, 128
        %s364 = scalar_lea.vmem [#allocation11], %s363
        // Predicated region
        $region57: #{tpu_custom_call.1} parent=47 // pred_check
          %p365 = pneg %p125
        $region58: #{tpu_custom_call.1} parent=47 // pred_check_branch
          %367 = sbr.rel (%p365) target = $region60
        $region59: #{tpu_custom_call.1} parent=47 // pred_region
          %368 = dma.done %s361, 2048
        $region60: #{tpu_custom_call.1} parent=47 // pred_fallthru
          _
        %s369 = sand.u32 %s56, 1
        %s370 = scalar_lea.sflag [#allocation7], %s369
        %s371 = sand.u32 %s56, 1
        %s372 = smul.addr %s371, 128
        %s373 = scalar_lea.vmem [#allocation6], %s372
        %p374 = pneg %p69
        %p375 = pneg %p66
        %s376 = sand.u32 %s27, 1
        %s377 = scalar_lea.sflag [#allocation10], %s376
        %s378 = sand.u32 %s84, 1
        %s379 = smul.addr %s378, 128
        %s380 = scalar_lea.vmem [#allocation9], %s379
        %p381 = pneg %p97
        %p382 = pneg %p94
        %s383 = sand.u32 %s27, 1
        %s384 = scalar_lea.sflag [#allocation10], %s383
        %s385 = sand.u32 %s112, 1
        %s386 = smul.addr %s385, 128
        %s387 = scalar_lea.vmem [#allocation11], %s386
        %p388 = pneg %p125
        %p389 = pneg %p122
        %p390 = pneg %p146
        %p391 = pneg %p143
        %p392 = pneg %p167
        %p393 = pneg %p164
        %p394 = pneg %p188
        %p395 = pneg %p185
        %p396 = pneg %p209
        %p397 = pneg %p206
        %p398 = pneg %p237
        %p399 = pneg %p234
        %s400 = sand.u32 %s224, 1
        %s401 = scalar_lea.sflag [#allocation8], %s400
        %s402 = sand.u32 %s224, 1
        %s403 = smul.addr %s402, 128
        %s404 = scalar_lea.vmem [#allocation12], %s403
        %s405 = smul.u32 16, %s34
        %p406 = scmp.eq.s32.totalorder %s34, 0
        // Predicated region
        $region61: #{tpu_custom_call.1} parent=47 // pred_check
          %p407 = pneg %p406
        $region62: #{tpu_custom_call.1} parent=47 // pred_check_branch
          %409 = sbr.rel (%p407) target = $region64
        $region63: #{tpu_custom_call.1} parent=47 // pred_region
          %v410 = vld [vmem:[%s346] sm:$0xff]
          %v411 = vld [vmem:[%s346 + $0x8] sm:$0xff]
          %v412 = vld [vmem:[%s346 + $0x10] sm:$0xff]
          %v413 = vld [vmem:[%s346 + $0x18] sm:$0xff]
          %v414 = vld [vmem:[%s346 + $0x20] sm:$0xff]
          %v415 = vld [vmem:[%s346 + $0x28] sm:$0xff]
          %v416 = vld [vmem:[%s346 + $0x30] sm:$0xff]
          %v417 = vld [vmem:[%s346 + $0x38] sm:$0xff]
          %v418 = vld [vmem:[%s346 + $0x40] sm:$0xff]
          %v419 = vld [vmem:[%s346 + $0x48] sm:$0xff]
          %v420 = vld [vmem:[%s346 + $0x50] sm:$0xff]
          %v421 = vld [vmem:[%s346 + $0x58] sm:$0xff]
          %v422 = vld [vmem:[%s346 + $0x60] sm:$0xff]
          %v423 = vld [vmem:[%s346 + $0x68] sm:$0xff]
          %v424 = vld [vmem:[%s346 + $0x70] sm:$0xff]
          %v425 = vld [vmem:[%s346 + $0x78] sm:$0xff]
          %v426 = vld [vmem:[%s3] sm:$0xff]
          %v427 = vld [vmem:[%s3 + $0x8] sm:$0xff]
          %v428 = vld [vmem:[%s3 + $0x10] sm:$0xff]
          %v429 = vld [vmem:[%s3 + $0x18] sm:$0xff]
          %v430 = vld [vmem:[%s3 + $0x20] sm:$0xff]
          %v431 = vld [vmem:[%s3 + $0x28] sm:$0xff]
          %v432 = vld [vmem:[%s3 + $0x30] sm:$0xff]
          %v433 = vld [vmem:[%s3 + $0x38] sm:$0xff]
          %v434 = vld [vmem:[%s3 + $0x40] sm:$0xff]
          %v435 = vld [vmem:[%s3 + $0x48] sm:$0xff]
          %v436 = vld [vmem:[%s3 + $0x50] sm:$0xff]
          %v437 = vld [vmem:[%s3 + $0x58] sm:$0xff]
          %v438 = vld [vmem:[%s3 + $0x60] sm:$0xff]
          %v439 = vld [vmem:[%s3 + $0x68] sm:$0xff]
          %v440 = vld [vmem:[%s3 + $0x70] sm:$0xff]
          %v441 = vld [vmem:[%s3 + $0x78] sm:$0xff]
          %v442 = vld [vmem:[%s4] sm:$0xff]
          %v443 = vld [vmem:[%s4 + $0x8] sm:$0xff]
          %v444 = vld [vmem:[%s4 + $0x10] sm:$0xff]
          %v445 = vld [vmem:[%s4 + $0x18] sm:$0xff]
          %v446 = vld [vmem:[%s4 + $0x20] sm:$0xff]
          %v447 = vld [vmem:[%s4 + $0x28] sm:$0xff]
          %v448 = vld [vmem:[%s4 + $0x30] sm:$0xff]
          %v449 = vld [vmem:[%s4 + $0x38] sm:$0xff]
          %v450 = vld [vmem:[%s4 + $0x40] sm:$0xff]
          %v451 = vld [vmem:[%s4 + $0x48] sm:$0xff]
          %v452 = vld [vmem:[%s4 + $0x50] sm:$0xff]
          %v453 = vld [vmem:[%s4 + $0x58] sm:$0xff]
          %v454 = vld [vmem:[%s4 + $0x60] sm:$0xff]
          %v455 = vld [vmem:[%s4 + $0x68] sm:$0xff]
          %v456 = vld [vmem:[%s4 + $0x70] sm:$0xff]
          %v457 = vld [vmem:[%s4 + $0x78] sm:$0xff]
          %459 = vset.pattern.permute.xlu0 0
          %460 = vperm.xlu0 %459, %v442
          %v461 = vpop.permute.xlu0 %460
          %464 = vset.pattern.permute.xlu0 0
          %465 = vperm.xlu0 %464, %v443
          %v466 = vpop.permute.xlu0 %465
          %469 = vset.pattern.permute.xlu0 0
          %470 = vperm.xlu0 %469, %v444
          %v471 = vpop.permute.xlu0 %470
          %474 = vset.pattern.permute.xlu0 0
          %475 = vperm.xlu0 %474, %v445
          %v476 = vpop.permute.xlu0 %475
          %479 = vset.pattern.permute.xlu0 0
          %480 = vperm.xlu0 %479, %v446
          %v481 = vpop.permute.xlu0 %480
          %484 = vset.pattern.permute.xlu0 0
          %485 = vperm.xlu0 %484, %v447
          %v486 = vpop.permute.xlu0 %485
          %489 = vset.pattern.permute.xlu0 0
          %490 = vperm.xlu0 %489, %v448
          %v491 = vpop.permute.xlu0 %490
          %494 = vset.pattern.permute.xlu0 0
          %495 = vperm.xlu0 %494, %v449
          %v496 = vpop.permute.xlu0 %495
          %499 = vset.pattern.permute.xlu0 0
          %500 = vperm.xlu0 %499, %v450
          %v501 = vpop.permute.xlu0 %500
          %504 = vset.pattern.permute.xlu0 0
          %505 = vperm.xlu0 %504, %v451
          %v506 = vpop.permute.xlu0 %505
          %509 = vset.pattern.permute.xlu0 0
          %510 = vperm.xlu0 %509, %v452
          %v511 = vpop.permute.xlu0 %510
          %514 = vset.pattern.permute.xlu0 0
          %515 = vperm.xlu0 %514, %v453
          %v516 = vpop.permute.xlu0 %515
          %519 = vset.pattern.permute.xlu0 0
          %520 = vperm.xlu0 %519, %v454
          %v521 = vpop.permute.xlu0 %520
          %524 = vset.pattern.permute.xlu0 0
          %525 = vperm.xlu0 %524, %v455
          %v526 = vpop.permute.xlu0 %525
          %529 = vset.pattern.permute.xlu0 0
          %530 = vperm.xlu0 %529, %v456
          %v531 = vpop.permute.xlu0 %530
          %534 = vset.pattern.permute.xlu0 0
          %535 = vperm.xlu0 %534, %v457
          %v536 = vpop.permute.xlu0 %535
          %538 = vmatprep.subr.mxu0 0.0
          %539 = vmatpush1.msra.mxu0 %v410
          %540 = vmatprep.subr.mxu0 0.0
          %541 = vmatpush1.msra.mxu0 %v411
          %542 = vmatprep.subr.mxu0 0.0
          %543 = vmatpush1.msra.mxu0 %v412
          %544 = vmatprep.subr.mxu0 0.0
          %545 = vmatpush1.msra.mxu0 %v413
          %546 = vmatprep.subr.mxu0 0.0
          %547 = vmatpush1.msra.mxu0 %v414
          %548 = vmatprep.subr.mxu0 0.0
          %549 = vmatpush1.msra.mxu0 %v415
          %550 = vmatprep.subr.mxu0 0.0
          %551 = vmatpush1.msra.mxu0 %v416
          %552 = vmatprep.subr.mxu0 0.0
          %553 = vmatpush1.msra.mxu0 %v417
          %554 = vmatprep.subr.mxu0 0.0
          %555 = vmatpush1.msra.mxu0 %v418
          %556 = vmatprep.subr.mxu0 0.0
          %557 = vmatpush1.msra.mxu0 %v419
          %558 = vmatprep.subr.mxu0 0.0
          %559 = vmatpush1.msra.mxu0 %v420
          %560 = vmatprep.subr.mxu0 0.0
          %561 = vmatpush1.msra.mxu0 %v421
          %562 = vmatprep.subr.mxu0 0.0
          %563 = vmatpush1.msra.mxu0 %v422
          %564 = vmatprep.subr.mxu0 0.0
          %565 = vmatpush1.msra.mxu0 %v423
          %566 = vmatprep.subr.mxu0 0.0
          %567 = vmatpush1.msra.mxu0 %v424
          %568 = vmatprep.subr.mxu0 0.0
          %569 = vmatpush1.msra.mxu0 %v425
          %570 = vmatprep.subr.mxu0 0.0
          %571 = vmatpush1.msra.mxu0 0.0
          %572 = vmatprep.subr.mxu0 0.0
          %573 = vmatpush1.msra.mxu0 0.0
          %574 = vmatprep.subr.mxu0 0.0
          %575 = vmatpush1.msra.mxu0 0.0
          %576 = vmatprep.subr.mxu0 0.0
          %577 = vmatpush1.msra.mxu0 0.0
          %578 = vmatprep.subr.mxu0 0.0
          %579 = vmatpush1.msra.mxu0 0.0
          %580 = vmatprep.subr.mxu0 0.0
          %581 = vmatpush1.msra.mxu0 0.0
          %582 = vmatprep.subr.mxu0 0.0
          %583 = vmatpush1.msra.mxu0 0.0
          %584 = vmatprep.subr.mxu0 0.0
          %585 = vmatpush1.msra.mxu0 0.0
          %586 = vmatprep.subr.mxu0 0.0
          %587 = vmatpush1.msra.mxu0 0.0
          %588 = vmatprep.subr.mxu0 0.0
          %589 = vmatpush1.msra.mxu0 0.0
          %590 = vmatprep.subr.mxu0 0.0
          %591 = vmatpush1.msra.mxu0 0.0
          %592 = vmatprep.subr.mxu0 0.0
          %593 = vmatpush1.msra.mxu0 0.0
          %594 = vmatprep.subr.mxu0 0.0
          %595 = vmatpush1.msra.mxu0 0.0
          %596 = vmatprep.subr.mxu0 0.0
          %597 = vmatpush1.msra.mxu0 0.0
          %598 = vmatprep.subr.mxu0 0.0
          %599 = vmatpush1.msra.mxu0 0.0
          %600 = vmatprep.subr.mxu0 0.0
          %601 = vmatpush1.msra.mxu0 0.0
          %602 = vmatprep.mubr.f32.mxu0 0.0
          %603 = vmatmul.mubr.f32.gmra.mrb[0].mxu0 %v426
          %v604 = vpop.f32.mrb[0].mxu0
          %v605 = vadd.f32 %v461, %v604
          %v606 = vpop.f32.mrb[0].mxu0
          %607 = vmatprep.mubr.f32.mxu0 0.0
          %608 = vmatmul.mubr.f32.gmra.mrb[0].mxu0 %v427
          %v609 = vpop.f32.mrb[0].mxu0
          %v610 = vadd.f32 %v466, %v609
          %v611 = vpop.f32.mrb[0].mxu0
          %612 = vmatprep.mubr.f32.mxu0 0.0
          %613 = vmatmul.mubr.f32.gmra.mrb[0].mxu0 %v428
          %v614 = vpop.f32.mrb[0].mxu0
          %v615 = vadd.f32 %v471, %v614
          %v616 = vpop.f32.mrb[0].mxu0
          %617 = vmatprep.mubr.f32.mxu0 0.0
          %618 = vmatmul.mubr.f32.gmra.mrb[0].mxu0 %v429
          %v619 = vpop.f32.mrb[0].mxu0
          %v620 = vadd.f32 %v476, %v619
          %v621 = vpop.f32.mrb[0].mxu0
          %622 = vmatprep.mubr.f32.mxu0 0.0
          %623 = vmatmul.mubr.f32.gmra.mrb[0].mxu0 %v430
          %v624 = vpop.f32.mrb[0].mxu0
          %v625 = vadd.f32 %v481, %v624
          %v626 = vpop.f32.mrb[0].mxu0
          %627 = vmatprep.mubr.f32.mxu0 0.0
          %628 = vmatmul.mubr.f32.gmra.mrb[0].mxu0 %v431
          %v629 = vpop.f32.mrb[0].mxu0
          %v630 = vadd.f32 %v486, %v629
          %v631 = vpop.f32.mrb[0].mxu0
          %632 = vmatprep.mubr.f32.mxu0 0.0
          %633 = vmatmul.mubr.f32.gmra.mrb[0].mxu0 %v432
          %v634 = vpop.f32.mrb[0].mxu0
          %v635 = vadd.f32 %v491, %v634
          %v636 = vpop.f32.mrb[0].mxu0
          %637 = vmatprep.mubr.f32.mxu0 0.0
          %638 = vmatmul.mubr.f32.gmra.mrb[0].mxu0 %v433
          %v639 = vpop.f32.mrb[0].mxu0
          %v640 = vadd.f32 %v496, %v639
          %v641 = vpop.f32.mrb[0].mxu0
          %642 = vmatprep.mubr.f32.mxu0 0.0
          %643 = vmatmul.mubr.f32.gmra.mrb[0].mxu0 %v434
          %v644 = vpop.f32.mrb[0].mxu0
          %v645 = vadd.f32 %v501, %v644
          %v646 = vpop.f32.mrb[0].mxu0
          %647 = vmatprep.mubr.f32.mxu0 0.0
          %648 = vmatmul.mubr.f32.gmra.mrb[0].mxu0 %v435
          %v649 = vpop.f32.mrb[0].mxu0
          %v650 = vadd.f32 %v506, %v649
          %v651 = vpop.f32.mrb[0].mxu0
          %652 = vmatprep.mubr.f32.mxu0 0.0
          %653 = vmatmul.mubr.f32.gmra.mrb[0].mxu0 %v436
          %v654 = vpop.f32.mrb[0].mxu0
          %v655 = vadd.f32 %v511, %v654
          %v656 = vpop.f32.mrb[0].mxu0
          %657 = vmatprep.mubr.f32.mxu0 0.0
          %658 = vmatmul.mubr.f32.gmra.mrb[0].mxu0 %v437
          %v659 = vpop.f32.mrb[0].mxu0
          %v660 = vadd.f32 %v516, %v659
          %v661 = vpop.f32.mrb[0].mxu0
          %662 = vmatprep.mubr.f32.mxu0 0.0
          %663 = vmatmul.mubr.f32.gmra.mrb[0].mxu0 %v438
          %v664 = vpop.f32.mrb[0].mxu0
          %v665 = vadd.f32 %v521, %v664
          %v666 = vpop.f32.mrb[0].mxu0
          %667 = vmatprep.mubr.f32.mxu0 0.0
          %668 = vmatmul.mubr.f32.gmra.mrb[0].mxu0 %v439
          %v669 = vpop.f32.mrb[0].mxu0
          %v670 = vadd.f32 %v526, %v669
          %v671 = vpop.f32.mrb[0].mxu0
          %672 = vmatprep.mubr.f32.mxu0 0.0
          %673 = vmatmul.mubr.f32.gmra.mrb[0].mxu0 %v440
          %v674 = vpop.f32.mrb[0].mxu0
          %v675 = vadd.f32 %v531, %v674
          %v676 = vpop.f32.mrb[0].mxu0
          %677 = vmatprep.mubr.f32.mxu0 0.0
          %678 = vmatmul.mubr.f32.gmra.mrb[0].mxu0 %v441
          %v679 = vpop.f32.mrb[0].mxu0
          %v680 = vadd.f32 %v536, %v679
          %v681 = vpop.f32.mrb[0].mxu0
          %682 = vdwg.mxu0
          %683 = vxpose.xlu0.b32.start [1/16] %v605, 128
          %684 = vxpose.xlu0.b32.cont [2/16] %v610, 128
          %685 = vxpose.xlu0.b32.cont [3/16] %v615, 128
          %686 = vxpose.xlu0.b32.cont [4/16] %v620, 128
          %687 = vxpose.xlu0.b32.cont [5/16] %v625, 128
          %688 = vxpose.xlu0.b32.cont [6/16] %v630, 128
          %689 = vxpose.xlu0.b32.cont [7/16] %v635, 128
          %690 = vxpose.xlu0.b32.cont [8/16] %v640, 128
          %691 = vxpose.xlu0.b32.cont [9/16] %v645, 128
          %692 = vxpose.xlu0.b32.cont [10/16] %v650, 128
          %693 = vxpose.xlu0.b32.cont [11/16] %v655, 128
          %694 = vxpose.xlu0.b32.cont [12/16] %v660, 128
          %695 = vxpose.xlu0.b32.cont [13/16] %v665, 128
          %696 = vxpose.xlu0.b32.cont [14/16] %v670, 128
          %697 = vxpose.xlu0.b32.cont [15/16] %v675, 128
          %698 = vxpose.xlu0.b32.end [16/16] %v680, 128
          %v699 = vpop.trf.xlu0
          %v700 = vpop.trf.xlu0
          %v701 = vpop.trf.xlu0
          %v702 = vpop.trf.xlu0
          %v703 = vpop.trf.xlu0
          %v704 = vpop.trf.xlu0
          %v705 = vpop.trf.xlu0
          %v706 = vpop.trf.xlu0
          %v707 = vpop.trf.xlu0
          %v708 = vpop.trf.xlu0
          %v709 = vpop.trf.xlu0
          %v710 = vpop.trf.xlu0
          %v711 = vpop.trf.xlu0
          %v712 = vpop.trf.xlu0
          %v713 = vpop.trf.xlu0
          %v714 = vpop.trf.xlu0
          %715 = vst [vmem:[#allocation2] sm:$0xff] %v699
          %716 = vst [vmem:[#allocation2 + $0x8] sm:$0xff] %v700
          %717 = vst [vmem:[#allocation2 + $0x10] sm:$0xff] %v701
          %718 = vst [vmem:[#allocation2 + $0x18] sm:$0xff] %v702
          %719 = vst [vmem:[#allocation2 + $0x20] sm:$0xff] %v703
          %720 = vst [vmem:[#allocation2 + $0x28] sm:$0xff] %v704
          %721 = vst [vmem:[#allocation2 + $0x30] sm:$0xff] %v705
          %722 = vst [vmem:[#allocation2 + $0x38] sm:$0xff] %v706
          %723 = vst [vmem:[#allocation2 + $0x40] sm:$0xff] %v707
          %724 = vst [vmem:[#allocation2 + $0x48] sm:$0xff] %v708
          %725 = vst [vmem:[#allocation2 + $0x50] sm:$0xff] %v709
          %726 = vst [vmem:[#allocation2 + $0x58] sm:$0xff] %v710
          %727 = vst [vmem:[#allocation2 + $0x60] sm:$0xff] %v711
          %728 = vst [vmem:[#allocation2 + $0x68] sm:$0xff] %v712
          %729 = vst [vmem:[#allocation2 + $0x70] sm:$0xff] %v713
          %730 = vst [vmem:[#allocation2 + $0x78] sm:$0xff] %v714
          %vm731 = vcmask 7168
          %732 = vst.msk [vmem:[#allocation3] sm:$0xff] %vm731, -inf
          %733 = vst.msk [vmem:[#allocation3 + $0x8] sm:$0xff] %vm731, -inf
          %734 = vst.msk [vmem:[#allocation3 + $0x10] sm:$0xff] %vm731, -inf
          %735 = vst.msk [vmem:[#allocation3 + $0x18] sm:$0xff] %vm731, -inf
          %736 = vst.msk [vmem:[#allocation3 + $0x20] sm:$0xff] %vm731, -inf
          %737 = vst.msk [vmem:[#allocation3 + $0x28] sm:$0xff] %vm731, -inf
          %738 = vst.msk [vmem:[#allocation3 + $0x30] sm:$0xff] %vm731, -inf
          %739 = vst.msk [vmem:[#allocation3 + $0x38] sm:$0xff] %vm731, -inf
          %740 = vst.msk [vmem:[#allocation3 + $0x40] sm:$0xff] %vm731, -inf
          %741 = vst.msk [vmem:[#allocation3 + $0x48] sm:$0xff] %vm731, -inf
          %742 = vst.msk [vmem:[#allocation3 + $0x50] sm:$0xff] %vm731, -inf
          %743 = vst.msk [vmem:[#allocation3 + $0x58] sm:$0xff] %vm731, -inf
          %744 = vst.msk [vmem:[#allocation3 + $0x60] sm:$0xff] %vm731, -inf
          %745 = vst.msk [vmem:[#allocation3 + $0x68] sm:$0xff] %vm731, -inf
          %746 = vst.msk [vmem:[#allocation3 + $0x70] sm:$0xff] %vm731, -inf
          %747 = vst.msk [vmem:[#allocation3 + $0x78] sm:$0xff] %vm731, -inf
          %748 = vst.msk [vmem:[#allocation4] sm:$0xff] %vm731, 0.0
          %749 = vst.msk [vmem:[#allocation4 + $0x8] sm:$0xff] %vm731, 0.0
          %750 = vst.msk [vmem:[#allocation4 + $0x10] sm:$0xff] %vm731, 0.0
          %751 = vst.msk [vmem:[#allocation4 + $0x18] sm:$0xff] %vm731, 0.0
          %752 = vst.msk [vmem:[#allocation4 + $0x20] sm:$0xff] %vm731, 0.0
          %753 = vst.msk [vmem:[#allocation4 + $0x28] sm:$0xff] %vm731, 0.0
          %754 = vst.msk [vmem:[#allocation4 + $0x30] sm:$0xff] %vm731, 0.0
          %755 = vst.msk [vmem:[#allocation4 + $0x38] sm:$0xff] %vm731, 0.0
          %756 = vst.msk [vmem:[#allocation4 + $0x40] sm:$0xff] %vm731, 0.0
          %757 = vst.msk [vmem:[#allocation4 + $0x48] sm:$0xff] %vm731, 0.0
          %758 = vst.msk [vmem:[#allocation4 + $0x50] sm:$0xff] %vm731, 0.0
          %759 = vst.msk [vmem:[#allocation4 + $0x58] sm:$0xff] %vm731, 0.0
          %760 = vst.msk [vmem:[#allocation4 + $0x60] sm:$0xff] %vm731, 0.0
          %761 = vst.msk [vmem:[#allocation4 + $0x68] sm:$0xff] %vm731, 0.0
          %762 = vst.msk [vmem:[#allocation4 + $0x70] sm:$0xff] %vm731, 0.0
          %763 = vst.msk [vmem:[#allocation4 + $0x78] sm:$0xff] %vm731, 0.0
          %764 = vst [vmem:[#allocation5] sm:$0xff] 0.0
          %765 = vst [vmem:[#allocation5 + $0x8] sm:$0xff] 0.0
          %766 = vst [vmem:[#allocation5 + $0x10] sm:$0xff] 0.0
          %767 = vst [vmem:[#allocation5 + $0x18] sm:$0xff] 0.0
          %768 = vst [vmem:[#allocation5 + $0x20] sm:$0xff] 0.0
          %769 = vst [vmem:[#allocation5 + $0x28] sm:$0xff] 0.0
          %770 = vst [vmem:[#allocation5 + $0x30] sm:$0xff] 0.0
          %771 = vst [vmem:[#allocation5 + $0x38] sm:$0xff] 0.0
          %772 = vst [vmem:[#allocation5 + $0x40] sm:$0xff] 0.0
          %773 = vst [vmem:[#allocation5 + $0x48] sm:$0xff] 0.0
          %774 = vst [vmem:[#allocation5 + $0x50] sm:$0xff] 0.0
          %775 = vst [vmem:[#allocation5 + $0x58] sm:$0xff] 0.0
          %776 = vst [vmem:[#allocation5 + $0x60] sm:$0xff] 0.0
          %777 = vst [vmem:[#allocation5 + $0x68] sm:$0xff] 0.0
          %778 = vst [vmem:[#allocation5 + $0x70] sm:$0xff] 0.0
          %779 = vst [vmem:[#allocation5 + $0x78] sm:$0xff] 0.0
        $region64: #{tpu_custom_call.1} parent=47 // pred_fallthru
          _
        %v780 = vld [vmem:[%s355] sm:$0xff]
        %v781 = vld [vmem:[%s355 + $0x8] sm:$0xff]
        %v782 = vld [vmem:[%s355 + $0x10] sm:$0xff]
        %v783 = vld [vmem:[%s355 + $0x18] sm:$0xff]
        %v784 = vld [vmem:[%s355 + $0x20] sm:$0xff]
        %v785 = vld [vmem:[%s355 + $0x28] sm:$0xff]
        %v786 = vld [vmem:[%s355 + $0x30] sm:$0xff]
        %v787 = vld [vmem:[%s355 + $0x38] sm:$0xff]
        %v788 = vld [vmem:[%s355 + $0x40] sm:$0xff]
        %v789 = vld [vmem:[%s355 + $0x48] sm:$0xff]
        %v790 = vld [vmem:[%s355 + $0x50] sm:$0xff]
        %v791 = vld [vmem:[%s355 + $0x58] sm:$0xff]
        %v792 = vld [vmem:[%s355 + $0x60] sm:$0xff]
        %v793 = vld [vmem:[%s355 + $0x68] sm:$0xff]
        %v794 = vld [vmem:[%s355 + $0x70] sm:$0xff]
        %v795 = vld [vmem:[%s355 + $0x78] sm:$0xff]
        %v796 = vld [vmem:[%s364] sm:$0xff]
        %v797 = vld [vmem:[%s364 + $0x8] sm:$0xff]
        %v798 = vld [vmem:[%s364 + $0x10] sm:$0xff]
        %v799 = vld [vmem:[%s364 + $0x18] sm:$0xff]
        %v800 = vld [vmem:[%s364 + $0x20] sm:$0xff]
        %v801 = vld [vmem:[%s364 + $0x28] sm:$0xff]
        %v802 = vld [vmem:[%s364 + $0x30] sm:$0xff]
        %v803 = vld [vmem:[%s364 + $0x38] sm:$0xff]
        %v804 = vld [vmem:[%s364 + $0x40] sm:$0xff]
        %v805 = vld [vmem:[%s364 + $0x48] sm:$0xff]
        %v806 = vld [vmem:[%s364 + $0x50] sm:$0xff]
        %v807 = vld [vmem:[%s364 + $0x58] sm:$0xff]
        %v808 = vld [vmem:[%s364 + $0x60] sm:$0xff]
        %v809 = vld [vmem:[%s364 + $0x68] sm:$0xff]
        %v810 = vld [vmem:[%s364 + $0x70] sm:$0xff]
        %v811 = vld [vmem:[%s364 + $0x78] sm:$0xff]
        %v812 = vld [vmem:[#allocation2] sm:$0xff]
        %v813 = vld [vmem:[#allocation2 + $0x8] sm:$0xff]
        %v814 = vld [vmem:[#allocation2 + $0x10] sm:$0xff]
        %v815 = vld [vmem:[#allocation2 + $0x18] sm:$0xff]
        %v816 = vld [vmem:[#allocation2 + $0x20] sm:$0xff]
        %v817 = vld [vmem:[#allocation2 + $0x28] sm:$0xff]
        %v818 = vld [vmem:[#allocation2 + $0x30] sm:$0xff]
        %v819 = vld [vmem:[#allocation2 + $0x38] sm:$0xff]
        %v820 = vld [vmem:[#allocation2 + $0x40] sm:$0xff]
        %v821 = vld [vmem:[#allocation2 + $0x48] sm:$0xff]
        %v822 = vld [vmem:[#allocation2 + $0x50] sm:$0xff]
        %v823 = vld [vmem:[#allocation2 + $0x58] sm:$0xff]
        %v824 = vld [vmem:[#allocation2 + $0x60] sm:$0xff]
        %v825 = vld [vmem:[#allocation2 + $0x68] sm:$0xff]
        %v826 = vld [vmem:[#allocation2 + $0x70] sm:$0xff]
        %v827 = vld [vmem:[#allocation2 + $0x78] sm:$0xff]
        %828 = vmatprep.subr.mxu0 0.0
        %829 = vmatpush1.msra.mxu0 %v780
        %830 = vmatprep.subr.mxu0 0.0
        %831 = vmatpush1.msra.mxu0 %v781
        %832 = vmatprep.subr.mxu0 0.0
        %833 = vmatpush1.msra.mxu0 %v782
        %834 = vmatprep.subr.mxu0 0.0
        %835 = vmatpush1.msra.mxu0 %v783
        %836 = vmatprep.subr.mxu0 0.0
        %837 = vmatpush1.msra.mxu0 %v784
        %838 = vmatprep.subr.mxu0 0.0
        %839 = vmatpush1.msra.mxu0 %v785
        %840 = vmatprep.subr.mxu0 0.0
        %841 = vmatpush1.msra.mxu0 %v786
        %842 = vmatprep.subr.mxu0 0.0
        %843 = vmatpush1.msra.mxu0 %v787
        %844 = vmatprep.subr.mxu0 0.0
        %845 = vmatpush1.msra.mxu0 %v788
        %846 = vmatprep.subr.mxu0 0.0
        %847 = vmatpush1.msra.mxu0 %v789
        %848 = vmatprep.subr.mxu0 0.0
        %849 = vmatpush1.msra.mxu0 %v790
        %850 = vmatprep.subr.mxu0 0.0
        %851 = vmatpush1.msra.mxu0 %v791
        %852 = vmatprep.subr.mxu0 0.0
        %853 = vmatpush1.msra.mxu0 %v792
        %854 = vmatprep.subr.mxu0 0.0
        %855 = vmatpush1.msra.mxu0 %v793
        %856 = vmatprep.subr.mxu0 0.0
        %857 = vmatpush1.msra.mxu0 %v794
        %858 = vmatprep.subr.mxu0 0.0
        %859 = vmatpush1.msra.mxu0 %v795
        %860 = vmatprep.subr.mxu0 0.0
        %861 = vmatpush1.msra.mxu0 0.0
        %862 = vmatprep.subr.mxu0 0.0
        %863 = vmatpush1.msra.mxu0 0.0
        %864 = vmatprep.subr.mxu0 0.0
        %865 = vmatpush1.msra.mxu0 0.0
        %866 = vmatprep.subr.mxu0 0.0
        %867 = vmatpush1.msra.mxu0 0.0
        %868 = vmatprep.subr.mxu0 0.0
        %869 = vmatpush1.msra.mxu0 0.0
        %870 = vmatprep.subr.mxu0 0.0
        %871 = vmatpush1.msra.mxu0 0.0
        %872 = vmatprep.subr.mxu0 0.0
        %873 = vmatpush1.msra.mxu0 0.0
        %874 = vmatprep.subr.mxu0 0.0
        %875 = vmatpush1.msra.mxu0 0.0
        %876 = vmatprep.subr.mxu0 0.0
        %877 = vmatpush1.msra.mxu0 0.0
        %878 = vmatprep.subr.mxu0 0.0
        %879 = vmatpush1.msra.mxu0 0.0
        %880 = vmatprep.subr.mxu0 0.0
        %881 = vmatpush1.msra.mxu0 0.0
        %882 = vmatprep.subr.mxu0 0.0
        %883 = vmatpush1.msra.mxu0 0.0
        %884 = vmatprep.subr.mxu0 0.0
        %885 = vmatpush1.msra.mxu0 0.0
        %886 = vmatprep.subr.mxu0 0.0
        %887 = vmatpush1.msra.mxu0 0.0
        %888 = vmatprep.subr.mxu0 0.0
        %889 = vmatpush1.msra.mxu0 0.0
        %890 = vmatprep.subr.mxu0 0.0
        %891 = vmatpush1.msra.mxu0 0.0
        %892 = vmatprep.mubr.f32.mxu0 0.0
        %893 = vmatmul.mubr.f32.gmra.mrb[0].mxu0 %v812
        %v894 = vpop.f32.mrb[0].mxu0
        %v895 = vadd.f32 0.0, %v894
        %v896 = vpop.f32.mrb[0].mxu0
        %897 = vmatprep.mubr.f32.mxu0 0.0
        %898 = vmatmul.mubr.f32.gmra.mrb[0].mxu0 %v813
        %v899 = vpop.f32.mrb[0].mxu0
        %v900 = vadd.f32 0.0, %v899
        %v901 = vpop.f32.mrb[0].mxu0
        %902 = vmatprep.mubr.f32.mxu0 0.0
        %903 = vmatmul.mubr.f32.gmra.mrb[0].mxu0 %v814
        %v904 = vpop.f32.mrb[0].mxu0
        %v905 = vadd.f32 0.0, %v904
        %v906 = vpop.f32.mrb[0].mxu0
        %907 = vmatprep.mubr.f32.mxu0 0.0
        %908 = vmatmul.mubr.f32.gmra.mrb[0].mxu0 %v815
        %v909 = vpop.f32.mrb[0].mxu0
        %v910 = vadd.f32 0.0, %v909
        %v911 = vpop.f32.mrb[0].mxu0
        %912 = vmatprep.mubr.f32.mxu0 0.0
        %913 = vmatmul.mubr.f32.gmra.mrb[0].mxu0 %v816
        %v914 = vpop.f32.mrb[0].mxu0
        %v915 = vadd.f32 0.0, %v914
        %v916 = vpop.f32.mrb[0].mxu0
        %917 = vmatprep.mubr.f32.mxu0 0.0
        %918 = vmatmul.mubr.f32.gmra.mrb[0].mxu0 %v817
        %v919 = vpop.f32.mrb[0].mxu0
        %v920 = vadd.f32 0.0, %v919
        %v921 = vpop.f32.mrb[0].mxu0
        %922 = vmatprep.mubr.f32.mxu0 0.0
        %923 = vmatmul.mubr.f32.gmra.mrb[0].mxu0 %v818
        %v924 = vpop.f32.mrb[0].mxu0
        %v925 = vadd.f32 0.0, %v924
        %v926 = vpop.f32.mrb[0].mxu0
        %927 = vmatprep.mubr.f32.mxu0 0.0
        %928 = vmatmul.mubr.f32.gmra.mrb[0].mxu0 %v819
        %v929 = vpop.f32.mrb[0].mxu0
        %v930 = vadd.f32 0.0, %v929
        %v931 = vpop.f32.mrb[0].mxu0
        %932 = vmatprep.mubr.f32.mxu0 0.0
        %933 = vmatmul.mubr.f32.gmra.mrb[0].mxu0 %v820
        %v934 = vpop.f32.mrb[0].mxu0
        %v935 = vadd.f32 0.0, %v934
        %v936 = vpop.f32.mrb[0].mxu0
        %937 = vmatprep.mubr.f32.mxu0 0.0
        %938 = vmatmul.mubr.f32.gmra.mrb[0].mxu0 %v821
        %v939 = vpop.f32.mrb[0].mxu0
        %v940 = vadd.f32 0.0, %v939
        %v941 = vpop.f32.mrb[0].mxu0
        %942 = vmatprep.mubr.f32.mxu0 0.0
        %943 = vmatmul.mubr.f32.gmra.mrb[0].mxu0 %v822
        %v944 = vpop.f32.mrb[0].mxu0
        %v945 = vadd.f32 0.0, %v944
        %v946 = vpop.f32.mrb[0].mxu0
        %947 = vmatprep.mubr.f32.mxu0 0.0
        %948 = vmatmul.mubr.f32.gmra.mrb[0].mxu0 %v823
        %v949 = vpop.f32.mrb[0].mxu0
        %v950 = vadd.f32 0.0, %v949
        %v951 = vpop.f32.mrb[0].mxu0
        %952 = vmatprep.mubr.f32.mxu0 0.0
        %953 = vmatmul.mubr.f32.gmra.mrb[0].mxu0 %v824
        %v954 = vpop.f32.mrb[0].mxu0
        %v955 = vadd.f32 0.0, %v954
        %v956 = vpop.f32.mrb[0].mxu0
        %957 = vmatprep.mubr.f32.mxu0 0.0
        %958 = vmatmul.mubr.f32.gmra.mrb[0].mxu0 %v825
        %v959 = vpop.f32.mrb[0].mxu0
        %v960 = vadd.f32 0.0, %v959
        %v961 = vpop.f32.mrb[0].mxu0
        %962 = vmatprep.mubr.f32.mxu0 0.0
        %963 = vmatmul.mubr.f32.gmra.mrb[0].mxu0 %v826
        %v964 = vpop.f32.mrb[0].mxu0
        %v965 = vadd.f32 0.0, %v964
        %v966 = vpop.f32.mrb[0].mxu0
        %967 = vmatprep.mubr.f32.mxu0 0.0
        %968 = vmatmul.mubr.f32.gmra.mrb[0].mxu0 %v827
        %v969 = vpop.f32.mrb[0].mxu0
        %v970 = vadd.f32 0.0, %v969
        %v971 = vpop.f32.mrb[0].mxu0
        %972 = vdwg.mxu0
        %v973 = vld [vmem:[#allocation3] sm:$0xff]
        %v974 = vld [vmem:[#allocation3 + $0x8] sm:$0xff]
        %v975 = vld [vmem:[#allocation3 + $0x10] sm:$0xff]
        %v976 = vld [vmem:[#allocation3 + $0x18] sm:$0xff]
        %v977 = vld [vmem:[#allocation3 + $0x20] sm:$0xff]
        %v978 = vld [vmem:[#allocation3 + $0x28] sm:$0xff]
        %v979 = vld [vmem:[#allocation3 + $0x30] sm:$0xff]
        %v980 = vld [vmem:[#allocation3 + $0x38] sm:$0xff]
        %v981 = vld [vmem:[#allocation3 + $0x40] sm:$0xff]
        %v982 = vld [vmem:[#allocation3 + $0x48] sm:$0xff]
        %v983 = vld [vmem:[#allocation3 + $0x50] sm:$0xff]
        %v984 = vld [vmem:[#allocation3 + $0x58] sm:$0xff]
        %v985 = vld [vmem:[#allocation3 + $0x60] sm:$0xff]
        %v986 = vld [vmem:[#allocation3 + $0x68] sm:$0xff]
        %v987 = vld [vmem:[#allocation3 + $0x70] sm:$0xff]
        %v988 = vld [vmem:[#allocation3 + $0x78] sm:$0xff]
        %989 = vmax.xlane.f32.xlu0 %v895
        %v990 = vpop.xlane.xlu0 %989
        %991 = vmax.xlane.f32.xlu0 %v900
        %v992 = vpop.xlane.xlu0 %991
        %993 = vmax.xlane.f32.xlu0 %v905
        %v994 = vpop.xlane.xlu0 %993
        %995 = vmax.xlane.f32.xlu0 %v910
        %v996 = vpop.xlane.xlu0 %995
        %997 = vmax.xlane.f32.xlu0 %v915
        %v998 = vpop.xlane.xlu0 %997
        %999 = vmax.xlane.f32.xlu0 %v920
        %v1000 = vpop.xlane.xlu0 %999
        %1001 = vmax.xlane.f32.xlu0 %v925
        %v1002 = vpop.xlane.xlu0 %1001
        %1003 = vmax.xlane.f32.xlu0 %v930
        %v1004 = vpop.xlane.xlu0 %1003
        %1005 = vmax.xlane.f32.xlu0 %v935
        %v1006 = vpop.xlane.xlu0 %1005
        %1007 = vmax.xlane.f32.xlu0 %v940
        %v1008 = vpop.xlane.xlu0 %1007
        %1009 = vmax.xlane.f32.xlu0 %v945
        %v1010 = vpop.xlane.xlu0 %1009
        %1011 = vmax.xlane.f32.xlu0 %v950
        %v1012 = vpop.xlane.xlu0 %1011
        %1013 = vmax.xlane.f32.xlu0 %v955
        %v1014 = vpop.xlane.xlu0 %1013
        %1015 = vmax.xlane.f32.xlu0 %v960
        %v1016 = vpop.xlane.xlu0 %1015
        %1017 = vmax.xlane.f32.xlu0 %v965
        %v1018 = vpop.xlane.xlu0 %1017
        %1019 = vmax.xlane.f32.xlu0 %v970
        %v1020 = vpop.xlane.xlu0 %1019
        %v1021 = vmax.f32 %v973, %v990
        %v1022 = vmax.f32 %v974, %v992
        %v1023 = vmax.f32 %v975, %v994
        %v1024 = vmax.f32 %v976, %v996
        %v1025 = vmax.f32 %v977, %v998
        %v1026 = vmax.f32 %v978, %v1000
        %v1027 = vmax.f32 %v979, %v1002
        %v1028 = vmax.f32 %v980, %v1004
        %v1029 = vmax.f32 %v981, %v1006
        %v1030 = vmax.f32 %v982, %v1008
        %v1031 = vmax.f32 %v983, %v1010
        %v1032 = vmax.f32 %v984, %v1012
        %v1033 = vmax.f32 %v985, %v1014
        %v1034 = vmax.f32 %v986, %v1016
        %v1035 = vmax.f32 %v987, %v1018
        %v1036 = vmax.f32 %v988, %v1020
        %v1037 = vsub.f32 %v973, %v1021
        %v1038 = vsub.f32 %v974, %v1022
        %v1039 = vsub.f32 %v975, %v1023
        %v1040 = vsub.f32 %v976, %v1024
        %v1041 = vsub.f32 %v977, %v1025
        %v1042 = vsub.f32 %v978, %v1026
        %v1043 = vsub.f32 %v979, %v1027
        %v1044 = vsub.f32 %v980, %v1028
        %v1045 = vsub.f32 %v981, %v1029
        %v1046 = vsub.f32 %v982, %v1030
        %v1047 = vsub.f32 %v983, %v1031
        %v1048 = vsub.f32 %v984, %v1032
        %v1049 = vsub.f32 %v985, %v1033
        %v1050 = vsub.f32 %v986, %v1034
        %v1051 = vsub.f32 %v987, %v1035
        %v1052 = vsub.f32 %v988, %v1036
        %v1053 = vmul.f32 %v1037, 1.442695
        %v1054 = vpow.pop %v1053
        %v1055 = vmul.f32 %v1038, 1.442695
        %v1056 = vpow.pop %v1055
        %v1057 = vmul.f32 %v1039, 1.442695
        %v1058 = vpow.pop %v1057
        %v1059 = vmul.f32 %v1040, 1.442695
        %v1060 = vpow.pop %v1059
        %v1061 = vmul.f32 %v1041, 1.442695
        %v1062 = vpow.pop %v1061
        %v1063 = vmul.f32 %v1042, 1.442695
        %v1064 = vpow.pop %v1063
        %v1065 = vmul.f32 %v1043, 1.442695
        %v1066 = vpow.pop %v1065
        %v1067 = vmul.f32 %v1044, 1.442695
        %v1068 = vpow.pop %v1067
        %v1069 = vmul.f32 %v1045, 1.442695
        %v1070 = vpow.pop %v1069
        %v1071 = vmul.f32 %v1046, 1.442695
        %v1072 = vpow.pop %v1071
        %v1073 = vmul.f32 %v1047, 1.442695
        %v1074 = vpow.pop %v1073
        %v1075 = vmul.f32 %v1048, 1.442695
        %v1076 = vpow.pop %v1075
        %v1077 = vmul.f32 %v1049, 1.442695
        %v1078 = vpow.pop %v1077
        %v1079 = vmul.f32 %v1050, 1.442695
        %v1080 = vpow.pop %v1079
        %v1081 = vmul.f32 %v1051, 1.442695
        %v1082 = vpow.pop %v1081
        %v1083 = vmul.f32 %v1052, 1.442695
        %v1084 = vpow.pop %v1083
        %1086 = vset.pattern.permute.xlu0 0
        %1087 = vperm.xlu0 %1086, %v1021
        %v1088 = vpop.permute.xlu0 %1087
        %1091 = vset.pattern.permute.xlu0 0
        %1092 = vperm.xlu0 %1091, %v1022
        %v1093 = vpop.permute.xlu0 %1092
        %1096 = vset.pattern.permute.xlu0 0
        %1097 = vperm.xlu0 %1096, %v1023
        %v1098 = vpop.permute.xlu0 %1097
        %1101 = vset.pattern.permute.xlu0 0
        %1102 = vperm.xlu0 %1101, %v1024
        %v1103 = vpop.permute.xlu0 %1102
        %1106 = vset.pattern.permute.xlu0 0
        %1107 = vperm.xlu0 %1106, %v1025
        %v1108 = vpop.permute.xlu0 %1107
        %1111 = vset.pattern.permute.xlu0 0
        %1112 = vperm.xlu0 %1111, %v1026
        %v1113 = vpop.permute.xlu0 %1112
        %1116 = vset.pattern.permute.xlu0 0
        %1117 = vperm.xlu0 %1116, %v1027
        %v1118 = vpop.permute.xlu0 %1117
        %1121 = vset.pattern.permute.xlu0 0
        %1122 = vperm.xlu0 %1121, %v1028
        %v1123 = vpop.permute.xlu0 %1122
        %1126 = vset.pattern.permute.xlu0 0
        %1127 = vperm.xlu0 %1126, %v1029
        %v1128 = vpop.permute.xlu0 %1127
        %1131 = vset.pattern.permute.xlu0 0
        %1132 = vperm.xlu0 %1131, %v1030
        %v1133 = vpop.permute.xlu0 %1132
        %1136 = vset.pattern.permute.xlu0 0
        %1137 = vperm.xlu0 %1136, %v1031
        %v1138 = vpop.permute.xlu0 %1137
        %1141 = vset.pattern.permute.xlu0 0
        %1142 = vperm.xlu0 %1141, %v1032
        %v1143 = vpop.permute.xlu0 %1142
        %1146 = vset.pattern.permute.xlu0 0
        %1147 = vperm.xlu0 %1146, %v1033
        %v1148 = vpop.permute.xlu0 %1147
        %1151 = vset.pattern.permute.xlu0 0
        %1152 = vperm.xlu0 %1151, %v1034
        %v1153 = vpop.permute.xlu0 %1152
        %1156 = vset.pattern.permute.xlu0 0
        %1157 = vperm.xlu0 %1156, %v1035
        %v1158 = vpop.permute.xlu0 %1157
        %1161 = vset.pattern.permute.xlu0 0
        %1162 = vperm.xlu0 %1161, %v1036
        %v1163 = vpop.permute.xlu0 %1162
        %v1165 = vsub.f32 %v895, %v1088
        %v1166 = vsub.f32 %v900, %v1093
        %v1167 = vsub.f32 %v905, %v1098
        %v1168 = vsub.f32 %v910, %v1103
        %v1169 = vsub.f32 %v915, %v1108
        %v1170 = vsub.f32 %v920, %v1113
        %v1171 = vsub.f32 %v925, %v1118
        %v1172 = vsub.f32 %v930, %v1123
        %v1173 = vsub.f32 %v935, %v1128
        %v1174 = vsub.f32 %v940, %v1133
        %v1175 = vsub.f32 %v945, %v1138
        %v1176 = vsub.f32 %v950, %v1143
        %v1177 = vsub.f32 %v955, %v1148
        %v1178 = vsub.f32 %v960, %v1153
        %v1179 = vsub.f32 %v965, %v1158
        %v1180 = vsub.f32 %v970, %v1163
        %v1181 = vmul.f32 %v1165, 1.442695
        %v1182 = vpow.pop %v1181
        %v1183 = vmul.f32 %v1166, 1.442695
        %v1184 = vpow.pop %v1183
        %v1185 = vmul.f32 %v1167, 1.442695
        %v1186 = vpow.pop %v1185
        %v1187 = vmul.f32 %v1168, 1.442695
        %v1188 = vpow.pop %v1187
        %v1189 = vmul.f32 %v1169, 1.442695
        %v1190 = vpow.pop %v1189
        %v1191 = vmul.f32 %v1170, 1.442695
        %v1192 = vpow.pop %v1191
        %v1193 = vmul.f32 %v1171, 1.442695
        %v1194 = vpow.pop %v1193
        %v1195 = vmul.f32 %v1172, 1.442695
        %v1196 = vpow.pop %v1195
        %v1197 = vmul.f32 %v1173, 1.442695
        %v1198 = vpow.pop %v1197
        %v1199 = vmul.f32 %v1174, 1.442695
        %v1200 = vpow.pop %v1199
        %v1201 = vmul.f32 %v1175, 1.442695
        %v1202 = vpow.pop %v1201
        %v1203 = vmul.f32 %v1176, 1.442695
        %v1204 = vpow.pop %v1203
        %v1205 = vmul.f32 %v1177, 1.442695
        %v1206 = vpow.pop %v1205
        %v1207 = vmul.f32 %v1178, 1.442695
        %v1208 = vpow.pop %v1207
        %v1209 = vmul.f32 %v1179, 1.442695
        %v1210 = vpow.pop %v1209
        %v1211 = vmul.f32 %v1180, 1.442695
        %v1212 = vpow.pop %v1211
        %v1213 = vld [vmem:[#allocation4] sm:$0xff]
        %v1214 = vld [vmem:[#allocation4 + $0x8] sm:$0xff]
        %v1215 = vld [vmem:[#allocation4 + $0x10] sm:$0xff]
        %v1216 = vld [vmem:[#allocation4 + $0x18] sm:$0xff]
        %v1217 = vld [vmem:[#allocation4 + $0x20] sm:$0xff]
        %v1218 = vld [vmem:[#allocation4 + $0x28] sm:$0xff]
        %v1219 = vld [vmem:[#allocation4 + $0x30] sm:$0xff]
        %v1220 = vld [vmem:[#allocation4 + $0x38] sm:$0xff]
        %v1221 = vld [vmem:[#allocation4 + $0x40] sm:$0xff]
        %v1222 = vld [vmem:[#allocation4 + $0x48] sm:$0xff]
        %v1223 = vld [vmem:[#allocation4 + $0x50] sm:$0xff]
        %v1224 = vld [vmem:[#allocation4 + $0x58] sm:$0xff]
        %v1225 = vld [vmem:[#allocation4 + $0x60] sm:$0xff]
        %v1226 = vld [vmem:[#allocation4 + $0x68] sm:$0xff]
        %v1227 = vld [vmem:[#allocation4 + $0x70] sm:$0xff]
        %v1228 = vld [vmem:[#allocation4 + $0x78] sm:$0xff]
        %v1229 = vmul.f32 %v1054, %v1213
        %v1230 = vmul.f32 %v1056, %v1214
        %v1231 = vmul.f32 %v1058, %v1215
        %v1232 = vmul.f32 %v1060, %v1216
        %v1233 = vmul.f32 %v1062, %v1217
        %v1234 = vmul.f32 %v1064, %v1218
        %v1235 = vmul.f32 %v1066, %v1219
        %v1236 = vmul.f32 %v1068, %v1220
        %v1237 = vmul.f32 %v1070, %v1221
        %v1238 = vmul.f32 %v1072, %v1222
        %v1239 = vmul.f32 %v1074, %v1223
        %v1240 = vmul.f32 %v1076, %v1224
        %v1241 = vmul.f32 %v1078, %v1225
        %v1242 = vmul.f32 %v1080, %v1226
        %v1243 = vmul.f32 %v1082, %v1227
        %v1244 = vmul.f32 %v1084, %v1228
        %1245 = vadd.xlane.f32.xlu0 %v1182
        %v1246 = vpop.xlane.xlu0 %1245
        %1247 = vadd.xlane.f32.xlu0 %v1184
        %v1248 = vpop.xlane.xlu0 %1247
        %1249 = vadd.xlane.f32.xlu0 %v1186
        %v1250 = vpop.xlane.xlu0 %1249
        %1251 = vadd.xlane.f32.xlu0 %v1188
        %v1252 = vpop.xlane.xlu0 %1251
        %1253 = vadd.xlane.f32.xlu0 %v1190
        %v1254 = vpop.xlane.xlu0 %1253
        %1255 = vadd.xlane.f32.xlu0 %v1192
        %v1256 = vpop.xlane.xlu0 %1255
        %1257 = vadd.xlane.f32.xlu0 %v1194
        %v1258 = vpop.xlane.xlu0 %1257
        %1259 = vadd.xlane.f32.xlu0 %v1196
        %v1260 = vpop.xlane.xlu0 %1259
        %1261 = vadd.xlane.f32.xlu0 %v1198
        %v1262 = vpop.xlane.xlu0 %1261
        %1263 = vadd.xlane.f32.xlu0 %v1200
        %v1264 = vpop.xlane.xlu0 %1263
        %1265 = vadd.xlane.f32.xlu0 %v1202
        %v1266 = vpop.xlane.xlu0 %1265
        %1267 = vadd.xlane.f32.xlu0 %v1204
        %v1268 = vpop.xlane.xlu0 %1267
        %1269 = vadd.xlane.f32.xlu0 %v1206
        %v1270 = vpop.xlane.xlu0 %1269
        %1271 = vadd.xlane.f32.xlu0 %v1208
        %v1272 = vpop.xlane.xlu0 %1271
        %1273 = vadd.xlane.f32.xlu0 %v1210
        %v1274 = vpop.xlane.xlu0 %1273
        %1275 = vadd.xlane.f32.xlu0 %v1212
        %v1276 = vpop.xlane.xlu0 %1275
        %v1277 = vadd.f32 %v1229, %v1246
        %v1278 = vadd.f32 %v1230, %v1248
        %v1279 = vadd.f32 %v1231, %v1250
        %v1280 = vadd.f32 %v1232, %v1252
        %v1281 = vadd.f32 %v1233, %v1254
        %v1282 = vadd.f32 %v1234, %v1256
        %v1283 = vadd.f32 %v1235, %v1258
        %v1284 = vadd.f32 %v1236, %v1260
        %v1285 = vadd.f32 %v1237, %v1262
        %v1286 = vadd.f32 %v1238, %v1264
        %v1287 = vadd.f32 %v1239, %v1266
        %v1288 = vadd.f32 %v1240, %v1268
        %v1289 = vadd.f32 %v1241, %v1270
        %v1290 = vadd.f32 %v1242, %v1272
        %v1291 = vadd.f32 %v1243, %v1274
        %v1292 = vadd.f32 %v1244, %v1276
        %vm1293 = vcmask 7168
        %1294 = vst.msk [vmem:[#allocation4] sm:$0xff] %vm1293, %v1277
        %1295 = vst.msk [vmem:[#allocation4 + $0x8] sm:$0xff] %vm1293, %v1278
        %1296 = vst.msk [vmem:[#allocation4 + $0x10] sm:$0xff] %vm1293, %v1279
        %1297 = vst.msk [vmem:[#allocation4 + $0x18] sm:$0xff] %vm1293, %v1280
        %1298 = vst.msk [vmem:[#allocation4 + $0x20] sm:$0xff] %vm1293, %v1281
        %1299 = vst.msk [vmem:[#allocation4 + $0x28] sm:$0xff] %vm1293, %v1282
        %1300 = vst.msk [vmem:[#allocation4 + $0x30] sm:$0xff] %vm1293, %v1283
        %1301 = vst.msk [vmem:[#allocation4 + $0x38] sm:$0xff] %vm1293, %v1284
        %1302 = vst.msk [vmem:[#allocation4 + $0x40] sm:$0xff] %vm1293, %v1285
        %1303 = vst.msk [vmem:[#allocation4 + $0x48] sm:$0xff] %vm1293, %v1286
        %1304 = vst.msk [vmem:[#allocation4 + $0x50] sm:$0xff] %vm1293, %v1287
        %1305 = vst.msk [vmem:[#allocation4 + $0x58] sm:$0xff] %vm1293, %v1288
        %1306 = vst.msk [vmem:[#allocation4 + $0x60] sm:$0xff] %vm1293, %v1289
        %1307 = vst.msk [vmem:[#allocation4 + $0x68] sm:$0xff] %vm1293, %v1290
        %1308 = vst.msk [vmem:[#allocation4 + $0x70] sm:$0xff] %vm1293, %v1291
        %1309 = vst.msk [vmem:[#allocation4 + $0x78] sm:$0xff] %vm1293, %v1292
        %v1310 = vld [vmem:[#allocation5] sm:$0xff]
        %v1311 = vld [vmem:[#allocation5 + $0x8] sm:$0xff]
        %v1312 = vld [vmem:[#allocation5 + $0x10] sm:$0xff]
        %v1313 = vld [vmem:[#allocation5 + $0x18] sm:$0xff]
        %v1314 = vld [vmem:[#allocation5 + $0x20] sm:$0xff]
        %v1315 = vld [vmem:[#allocation5 + $0x28] sm:$0xff]
        %v1316 = vld [vmem:[#allocation5 + $0x30] sm:$0xff]
        %v1317 = vld [vmem:[#allocation5 + $0x38] sm:$0xff]
        %v1318 = vld [vmem:[#allocation5 + $0x40] sm:$0xff]
        %v1319 = vld [vmem:[#allocation5 + $0x48] sm:$0xff]
        %v1320 = vld [vmem:[#allocation5 + $0x50] sm:$0xff]
        %v1321 = vld [vmem:[#allocation5 + $0x58] sm:$0xff]
        %v1322 = vld [vmem:[#allocation5 + $0x60] sm:$0xff]
        %v1323 = vld [vmem:[#allocation5 + $0x68] sm:$0xff]
        %v1324 = vld [vmem:[#allocation5 + $0x70] sm:$0xff]
        %v1325 = vld [vmem:[#allocation5 + $0x78] sm:$0xff]
        %1327 = vset.pattern.permute.xlu0 0
        %1328 = vperm.xlu0 %1327, %v1054
        %v1329 = vpop.permute.xlu0 %1328
        %1332 = vset.pattern.permute.xlu0 0
        %1333 = vperm.xlu0 %1332, %v1056
        %v1334 = vpop.permute.xlu0 %1333
        %1337 = vset.pattern.permute.xlu0 0
        %1338 = vperm.xlu0 %1337, %v1058
        %v1339 = vpop.permute.xlu0 %1338
        %1342 = vset.pattern.permute.xlu0 0
        %1343 = vperm.xlu0 %1342, %v1060
        %v1344 = vpop.permute.xlu0 %1343
        %1347 = vset.pattern.permute.xlu0 0
        %1348 = vperm.xlu0 %1347, %v1062
        %v1349 = vpop.permute.xlu0 %1348
        %1352 = vset.pattern.permute.xlu0 0
        %1353 = vperm.xlu0 %1352, %v1064
        %v1354 = vpop.permute.xlu0 %1353
        %1357 = vset.pattern.permute.xlu0 0
        %1358 = vperm.xlu0 %1357, %v1066
        %v1359 = vpop.permute.xlu0 %1358
        %1362 = vset.pattern.permute.xlu0 0
        %1363 = vperm.xlu0 %1362, %v1068
        %v1364 = vpop.permute.xlu0 %1363
        %1367 = vset.pattern.permute.xlu0 0
        %1368 = vperm.xlu0 %1367, %v1070
        %v1369 = vpop.permute.xlu0 %1368
        %1372 = vset.pattern.permute.xlu0 0
        %1373 = vperm.xlu0 %1372, %v1072
        %v1374 = vpop.permute.xlu0 %1373
        %1377 = vset.pattern.permute.xlu0 0
        %1378 = vperm.xlu0 %1377, %v1074
        %v1379 = vpop.permute.xlu0 %1378
        %1382 = vset.pattern.permute.xlu0 0
        %1383 = vperm.xlu0 %1382, %v1076
        %v1384 = vpop.permute.xlu0 %1383
        %1387 = vset.pattern.permute.xlu0 0
        %1388 = vperm.xlu0 %1387, %v1078
        %v1389 = vpop.permute.xlu0 %1388
        %1392 = vset.pattern.permute.xlu0 0
        %1393 = vperm.xlu0 %1392, %v1080
        %v1394 = vpop.permute.xlu0 %1393
        %1397 = vset.pattern.permute.xlu0 0
        %1398 = vperm.xlu0 %1397, %v1082
        %v1399 = vpop.permute.xlu0 %1398
        %1402 = vset.pattern.permute.xlu0 0
        %1403 = vperm.xlu0 %1402, %v1084
        %v1404 = vpop.permute.xlu0 %1403
        %v1406 = vmul.f32 %v1329, %v1310
        %v1407 = vmul.f32 %v1334, %v1311
        %v1408 = vmul.f32 %v1339, %v1312
        %v1409 = vmul.f32 %v1344, %v1313
        %v1410 = vmul.f32 %v1349, %v1314
        %v1411 = vmul.f32 %v1354, %v1315
        %v1412 = vmul.f32 %v1359, %v1316
        %v1413 = vmul.f32 %v1364, %v1317
        %v1414 = vmul.f32 %v1369, %v1318
        %v1415 = vmul.f32 %v1374, %v1319
        %v1416 = vmul.f32 %v1379, %v1320
        %v1417 = vmul.f32 %v1384, %v1321
        %v1418 = vmul.f32 %v1389, %v1322
        %v1419 = vmul.f32 %v1394, %v1323
        %v1420 = vmul.f32 %v1399, %v1324
        %v1421 = vmul.f32 %v1404, %v1325
        %1422 = vmatprep.subr.mxu0 0.0
        %1423 = vmatpush1.msra.mxu0 %v796
        %1424 = vmatprep.subr.mxu0 0.0
        %1425 = vmatpush1.msra.mxu0 %v797
        %1426 = vmatprep.subr.mxu0 0.0
        %1427 = vmatpush1.msra.mxu0 %v798
        %1428 = vmatprep.subr.mxu0 0.0
        %1429 = vmatpush1.msra.mxu0 %v799
        %1430 = vmatprep.subr.mxu0 0.0
        %1431 = vmatpush1.msra.mxu0 %v800
        %1432 = vmatprep.subr.mxu0 0.0
        %1433 = vmatpush1.msra.mxu0 %v801
        %1434 = vmatprep.subr.mxu0 0.0
        %1435 = vmatpush1.msra.mxu0 %v802
        %1436 = vmatprep.subr.mxu0 0.0
        %1437 = vmatpush1.msra.mxu0 %v803
        %1438 = vmatprep.subr.mxu0 0.0
        %1439 = vmatpush1.msra.mxu0 %v804
        %1440 = vmatprep.subr.mxu0 0.0
        %1441 = vmatpush1.msra.mxu0 %v805
        %1442 = vmatprep.subr.mxu0 0.0
        %1443 = vmatpush1.msra.mxu0 %v806
        %1444 = vmatprep.subr.mxu0 0.0
        %1445 = vmatpush1.msra.mxu0 %v807
        %1446 = vmatprep.subr.mxu0 0.0
        %1447 = vmatpush1.msra.mxu0 %v808
        %1448 = vmatprep.subr.mxu0 0.0
        %1449 = vmatpush1.msra.mxu0 %v809
        %1450 = vmatprep.subr.mxu0 0.0
        %1451 = vmatpush1.msra.mxu0 %v810
        %1452 = vmatprep.subr.mxu0 0.0
        %1453 = vmatpush1.msra.mxu0 %v811
        %1454 = vmatprep.subr.mxu0 0.0
        %1455 = vmatpush1.msra.mxu0 0.0
        %1456 = vmatprep.subr.mxu0 0.0
        %1457 = vmatpush1.msra.mxu0 0.0
        %1458 = vmatprep.subr.mxu0 0.0
        %1459 = vmatpush1.msra.mxu0 0.0
        %1460 = vmatprep.subr.mxu0 0.0
        %1461 = vmatpush1.msra.mxu0 0.0
        %1462 = vmatprep.subr.mxu0 0.0
        %1463 = vmatpush1.msra.mxu0 0.0
        %1464 = vmatprep.subr.mxu0 0.0
        %1465 = vmatpush1.msra.mxu0 0.0
        %1466 = vmatprep.subr.mxu0 0.0
        %1467 = vmatpush1.msra.mxu0 0.0
        %1468 = vmatprep.subr.mxu0 0.0
        %1469 = vmatpush1.msra.mxu0 0.0
        %1470 = vmatprep.subr.mxu0 0.0
        %1471 = vmatpush1.msra.mxu0 0.0
        %1472 = vmatprep.subr.mxu0 0.0
        %1473 = vmatpush1.msra.mxu0 0.0
        %1474 = vmatprep.subr.mxu0 0.0
        %1475 = vmatpush1.msra.mxu0 0.0
        %1476 = vmatprep.subr.mxu0 0.0
        %1477 = vmatpush1.msra.mxu0 0.0
        %1478 = vmatprep.subr.mxu0 0.0
        %1479 = vmatpush1.msra.mxu0 0.0
        %1480 = vmatprep.subr.mxu0 0.0
        %1481 = vmatpush1.msra.mxu0 0.0
        %1482 = vmatprep.subr.mxu0 0.0
        %1483 = vmatpush1.msra.mxu0 0.0
        %1484 = vmatprep.subr.mxu0 0.0
        %1485 = vmatpush1.msra.mxu0 0.0
        %1486 = vmatprep.mubr.f32.mxu0 0.0
        %1487 = vmatmul.mubr.f32.gmra.mrb[0].mxu0 %v1182
        %v1488 = vpop.f32.mrb[0].mxu0
        %v1489 = vadd.f32 0.0, %v1488
        %v1490 = vpop.f32.mrb[0].mxu0
        %1491 = vmatprep.mubr.f32.mxu0 0.0
        %1492 = vmatmul.mubr.f32.gmra.mrb[0].mxu0 %v1184
        %v1493 = vpop.f32.mrb[0].mxu0
        %v1494 = vadd.f32 0.0, %v1493
        %v1495 = vpop.f32.mrb[0].mxu0
        %1496 = vmatprep.mubr.f32.mxu0 0.0
        %1497 = vmatmul.mubr.f32.gmra.mrb[0].mxu0 %v1186
        %v1498 = vpop.f32.mrb[0].mxu0
        %v1499 = vadd.f32 0.0, %v1498
        %v1500 = vpop.f32.mrb[0].mxu0
        %1501 = vmatprep.mubr.f32.mxu0 0.0
        %1502 = vmatmul.mubr.f32.gmra.mrb[0].mxu0 %v1188
        %v1503 = vpop.f32.mrb[0].mxu0
        %v1504 = vadd.f32 0.0, %v1503
        %v1505 = vpop.f32.mrb[0].mxu0
        %1506 = vmatprep.mubr.f32.mxu0 0.0
        %1507 = vmatmul.mubr.f32.gmra.mrb[0].mxu0 %v1190
        %v1508 = vpop.f32.mrb[0].mxu0
        %v1509 = vadd.f32 0.0, %v1508
        %v1510 = vpop.f32.mrb[0].mxu0
        %1511 = vmatprep.mubr.f32.mxu0 0.0
        %1512 = vmatmul.mubr.f32.gmra.mrb[0].mxu0 %v1192
        %v1513 = vpop.f32.mrb[0].mxu0
        %v1514 = vadd.f32 0.0, %v1513
        %v1515 = vpop.f32.mrb[0].mxu0
        %1516 = vmatprep.mubr.f32.mxu0 0.0
        %1517 = vmatmul.mubr.f32.gmra.mrb[0].mxu0 %v1194
        %v1518 = vpop.f32.mrb[0].mxu0
        %v1519 = vadd.f32 0.0, %v1518
        %v1520 = vpop.f32.mrb[0].mxu0
        %1521 = vmatprep.mubr.f32.mxu0 0.0
        %1522 = vmatmul.mubr.f32.gmra.mrb[0].mxu0 %v1196
        %v1523 = vpop.f32.mrb[0].mxu0
        %v1524 = vadd.f32 0.0, %v1523
        %v1525 = vpop.f32.mrb[0].mxu0
        %1526 = vmatprep.mubr.f32.mxu0 0.0
        %1527 = vmatmul.mubr.f32.gmra.mrb[0].mxu0 %v1198
        %v1528 = vpop.f32.mrb[0].mxu0
        %v1529 = vadd.f32 0.0, %v1528
        %v1530 = vpop.f32.mrb[0].mxu0
        %1531 = vmatprep.mubr.f32.mxu0 0.0
        %1532 = vmatmul.mubr.f32.gmra.mrb[0].mxu0 %v1200
        %v1533 = vpop.f32.mrb[0].mxu0
        %v1534 = vadd.f32 0.0, %v1533
        %v1535 = vpop.f32.mrb[0].mxu0
        %1536 = vmatprep.mubr.f32.mxu0 0.0
        %1537 = vmatmul.mubr.f32.gmra.mrb[0].mxu0 %v1202
        %v1538 = vpop.f32.mrb[0].mxu0
        %v1539 = vadd.f32 0.0, %v1538
        %v1540 = vpop.f32.mrb[0].mxu0
        %1541 = vmatprep.mubr.f32.mxu0 0.0
        %1542 = vmatmul.mubr.f32.gmra.mrb[0].mxu0 %v1204
        %v1543 = vpop.f32.mrb[0].mxu0
        %v1544 = vadd.f32 0.0, %v1543
        %v1545 = vpop.f32.mrb[0].mxu0
        %1546 = vmatprep.mubr.f32.mxu0 0.0
        %1547 = vmatmul.mubr.f32.gmra.mrb[0].mxu0 %v1206
        %v1548 = vpop.f32.mrb[0].mxu0
        %v1549 = vadd.f32 0.0, %v1548
        %v1550 = vpop.f32.mrb[0].mxu0
        %1551 = vmatprep.mubr.f32.mxu0 0.0
        %1552 = vmatmul.mubr.f32.gmra.mrb[0].mxu0 %v1208
        %v1553 = vpop.f32.mrb[0].mxu0
        %v1554 = vadd.f32 0.0, %v1553
        %v1555 = vpop.f32.mrb[0].mxu0
        %1556 = vmatprep.mubr.f32.mxu0 0.0
        %1557 = vmatmul.mubr.f32.gmra.mrb[0].mxu0 %v1210
        %v1558 = vpop.f32.mrb[0].mxu0
        %v1559 = vadd.f32 0.0, %v1558
        %v1560 = vpop.f32.mrb[0].mxu0
        %1561 = vmatprep.mubr.f32.mxu0 0.0
        %1562 = vmatmul.mubr.f32.gmra.mrb[0].mxu0 %v1212
        %v1563 = vpop.f32.mrb[0].mxu0
        %v1564 = vadd.f32 0.0, %v1563
        %v1565 = vpop.f32.mrb[0].mxu0
        %1566 = vdwg.mxu0
        %v1567 = vadd.f32 %v1406, %v1489
        %v1568 = vadd.f32 %v1407, %v1494
        %v1569 = vadd.f32 %v1408, %v1499
        %v1570 = vadd.f32 %v1409, %v1504
        %v1571 = vadd.f32 %v1410, %v1509
        %v1572 = vadd.f32 %v1411, %v1514
        %v1573 = vadd.f32 %v1412, %v1519
        %v1574 = vadd.f32 %v1413, %v1524
        %v1575 = vadd.f32 %v1414, %v1529
        %v1576 = vadd.f32 %v1415, %v1534
        %v1577 = vadd.f32 %v1416, %v1539
        %v1578 = vadd.f32 %v1417, %v1544
        %v1579 = vadd.f32 %v1418, %v1549
        %v1580 = vadd.f32 %v1419, %v1554
        %v1581 = vadd.f32 %v1420, %v1559
        %v1582 = vadd.f32 %v1421, %v1564
        %1583 = vst [vmem:[#allocation5] sm:$0xff] %v1567
        %1584 = vst [vmem:[#allocation5 + $0x8] sm:$0xff] %v1568
        %1585 = vst [vmem:[#allocation5 + $0x10] sm:$0xff] %v1569
        %1586 = vst [vmem:[#allocation5 + $0x18] sm:$0xff] %v1570
        %1587 = vst [vmem:[#allocation5 + $0x20] sm:$0xff] %v1571
        %1588 = vst [vmem:[#allocation5 + $0x28] sm:$0xff] %v1572
        %1589 = vst [vmem:[#allocation5 + $0x30] sm:$0xff] %v1573
        %1590 = vst [vmem:[#allocation5 + $0x38] sm:$0xff] %v1574
        %1591 = vst [vmem:[#allocation5 + $0x40] sm:$0xff] %v1575
        %1592 = vst [vmem:[#allocation5 + $0x48] sm:$0xff] %v1576
        %1593 = vst [vmem:[#allocation5 + $0x50] sm:$0xff] %v1577
        %1594 = vst [vmem:[#allocation5 + $0x58] sm:$0xff] %v1578
        %1595 = vst [vmem:[#allocation5 + $0x60] sm:$0xff] %v1579
        %1596 = vst [vmem:[#allocation5 + $0x68] sm:$0xff] %v1580
        %1597 = vst [vmem:[#allocation5 + $0x70] sm:$0xff] %v1581
        %1598 = vst [vmem:[#allocation5 + $0x78] sm:$0xff] %v1582
        %1599 = vst.msk [vmem:[#allocation3] sm:$0xff] %vm1293, %v1021
        %1600 = vst.msk [vmem:[#allocation3 + $0x8] sm:$0xff] %vm1293, %v1022
        %1601 = vst.msk [vmem:[#allocation3 + $0x10] sm:$0xff] %vm1293, %v1023
        %1602 = vst.msk [vmem:[#allocation3 + $0x18] sm:$0xff] %vm1293, %v1024
        %1603 = vst.msk [vmem:[#allocation3 + $0x20] sm:$0xff] %vm1293, %v1025
        %1604 = vst.msk [vmem:[#allocation3 + $0x28] sm:$0xff] %vm1293, %v1026
        %1605 = vst.msk [vmem:[#allocation3 + $0x30] sm:$0xff] %vm1293, %v1027
        %1606 = vst.msk [vmem:[#allocation3 + $0x38] sm:$0xff] %vm1293, %v1028
        %1607 = vst.msk [vmem:[#allocation3 + $0x40] sm:$0xff] %vm1293, %v1029
        %1608 = vst.msk [vmem:[#allocation3 + $0x48] sm:$0xff] %vm1293, %v1030
        %1609 = vst.msk [vmem:[#allocation3 + $0x50] sm:$0xff] %vm1293, %v1031
        %1610 = vst.msk [vmem:[#allocation3 + $0x58] sm:$0xff] %vm1293, %v1032
        %1611 = vst.msk [vmem:[#allocation3 + $0x60] sm:$0xff] %vm1293, %v1033
        %1612 = vst.msk [vmem:[#allocation3 + $0x68] sm:$0xff] %vm1293, %v1034
        %1613 = vst.msk [vmem:[#allocation3 + $0x70] sm:$0xff] %vm1293, %v1035
        %1614 = vst.msk [vmem:[#allocation3 + $0x78] sm:$0xff] %vm1293, %v1036
        %p1615 = scmp.eq.s32.totalorder %s34, 1
        // Predicated region
        $region65: #{tpu_custom_call.1} parent=47 // pred_check
          %p1616 = pneg %p1615
        $region66: #{tpu_custom_call.1} parent=47 // pred_check_branch
          %1618 = sbr.rel (%p1616) target = $region68
        $region67: #{tpu_custom_call.1} parent=47 // pred_region
          %v1619 = vld [vmem:[#allocation4] sm:$0xff]
          %v1620 = vld [vmem:[#allocation4 + $0x8] sm:$0xff]
          %v1621 = vld [vmem:[#allocation4 + $0x10] sm:$0xff]
          %v1622 = vld [vmem:[#allocation4 + $0x18] sm:$0xff]
          %v1623 = vld [vmem:[#allocation4 + $0x20] sm:$0xff]
          %v1624 = vld [vmem:[#allocation4 + $0x28] sm:$0xff]
          %v1625 = vld [vmem:[#allocation4 + $0x30] sm:$0xff]
          %v1626 = vld [vmem:[#allocation4 + $0x38] sm:$0xff]
          %v1627 = vld [vmem:[#allocation4 + $0x40] sm:$0xff]
          %v1628 = vld [vmem:[#allocation4 + $0x48] sm:$0xff]
          %v1629 = vld [vmem:[#allocation4 + $0x50] sm:$0xff]
          %v1630 = vld [vmem:[#allocation4 + $0x58] sm:$0xff]
          %v1631 = vld [vmem:[#allocation4 + $0x60] sm:$0xff]
          %v1632 = vld [vmem:[#allocation4 + $0x68] sm:$0xff]
          %v1633 = vld [vmem:[#allocation4 + $0x70] sm:$0xff]
          %v1634 = vld [vmem:[#allocation4 + $0x78] sm:$0xff]
          %v1635 = vrcp.pop %v1619
          %v1636 = vrcp.pop %v1620
          %v1637 = vrcp.pop %v1621
          %v1638 = vrcp.pop %v1622
          %v1639 = vrcp.pop %v1623
          %v1640 = vrcp.pop %v1624
          %v1641 = vrcp.pop %v1625
          %v1642 = vrcp.pop %v1626
          %v1643 = vrcp.pop %v1627
          %v1644 = vrcp.pop %v1628
          %v1645 = vrcp.pop %v1629
          %v1646 = vrcp.pop %v1630
          %v1647 = vrcp.pop %v1631
          %v1648 = vrcp.pop %v1632
          %v1649 = vrcp.pop %v1633
          %v1650 = vrcp.pop %v1634
          %v1651 = vmul.f32 %v1619, %v1635
          %v1652 = vmul.f32 %v1620, %v1636
          %v1653 = vmul.f32 %v1621, %v1637
          %v1654 = vmul.f32 %v1622, %v1638
          %v1655 = vmul.f32 %v1623, %v1639
          %v1656 = vmul.f32 %v1624, %v1640
          %v1657 = vmul.f32 %v1625, %v1641
          %v1658 = vmul.f32 %v1626, %v1642
          %v1659 = vmul.f32 %v1627, %v1643
          %v1660 = vmul.f32 %v1628, %v1644
          %v1661 = vmul.f32 %v1629, %v1645
          %v1662 = vmul.f32 %v1630, %v1646
          %v1663 = vmul.f32 %v1631, %v1647
          %v1664 = vmul.f32 %v1632, %v1648
          %v1665 = vmul.f32 %v1633, %v1649
          %v1666 = vmul.f32 %v1634, %v1650
          %v1667 = vsub.f32 2.0, %v1651
          %v1668 = vsub.f32 2.0, %v1652
          %v1669 = vsub.f32 2.0, %v1653
          %v1670 = vsub.f32 2.0, %v1654
          %v1671 = vsub.f32 2.0, %v1655
          %v1672 = vsub.f32 2.0, %v1656
          %v1673 = vsub.f32 2.0, %v1657
          %v1674 = vsub.f32 2.0, %v1658
          %v1675 = vsub.f32 2.0, %v1659
          %v1676 = vsub.f32 2.0, %v1660
          %v1677 = vsub.f32 2.0, %v1661
          %v1678 = vsub.f32 2.0, %v1662
          %v1679 = vsub.f32 2.0, %v1663
          %v1680 = vsub.f32 2.0, %v1664
          %v1681 = vsub.f32 2.0, %v1665
          %v1682 = vsub.f32 2.0, %v1666
          %v1683 = vmul.f32 %v1635, %v1667
          %v1684 = vmul.f32 %v1636, %v1668
          %v1685 = vmul.f32 %v1637, %v1669
          %v1686 = vmul.f32 %v1638, %v1670
          %v1687 = vmul.f32 %v1639, %v1671
          %v1688 = vmul.f32 %v1640, %v1672
          %v1689 = vmul.f32 %v1641, %v1673
          %v1690 = vmul.f32 %v1642, %v1674
          %v1691 = vmul.f32 %v1643, %v1675
          %v1692 = vmul.f32 %v1644, %v1676
          %v1693 = vmul.f32 %v1645, %v1677
          %v1694 = vmul.f32 %v1646, %v1678
          %v1695 = vmul.f32 %v1647, %v1679
          %v1696 = vmul.f32 %v1648, %v1680
          %v1697 = vmul.f32 %v1649, %v1681
          %v1698 = vmul.f32 %v1650, %v1682
          %v1699 = vld [vmem:[#allocation5] sm:$0xff]
          %v1700 = vld [vmem:[#allocation5 + $0x8] sm:$0xff]
          %v1701 = vld [vmem:[#allocation5 + $0x10] sm:$0xff]
          %v1702 = vld [vmem:[#allocation5 + $0x18] sm:$0xff]
          %v1703 = vld [vmem:[#allocation5 + $0x20] sm:$0xff]
          %v1704 = vld [vmem:[#allocation5 + $0x28] sm:$0xff]
          %v1705 = vld [vmem:[#allocation5 + $0x30] sm:$0xff]
          %v1706 = vld [vmem:[#allocation5 + $0x38] sm:$0xff]
          %v1707 = vld [vmem:[#allocation5 + $0x40] sm:$0xff]
          %v1708 = vld [vmem:[#allocation5 + $0x48] sm:$0xff]
          %v1709 = vld [vmem:[#allocation5 + $0x50] sm:$0xff]
          %v1710 = vld [vmem:[#allocation5 + $0x58] sm:$0xff]
          %v1711 = vld [vmem:[#allocation5 + $0x60] sm:$0xff]
          %v1712 = vld [vmem:[#allocation5 + $0x68] sm:$0xff]
          %v1713 = vld [vmem:[#allocation5 + $0x70] sm:$0xff]
          %v1714 = vld [vmem:[#allocation5 + $0x78] sm:$0xff]
          %1716 = vset.pattern.permute.xlu0 0
          %1717 = vperm.xlu0 %1716, %v1683
          %v1718 = vpop.permute.xlu0 %1717
          %1721 = vset.pattern.permute.xlu0 0
          %1722 = vperm.xlu0 %1721, %v1684
          %v1723 = vpop.permute.xlu0 %1722
          %1726 = vset.pattern.permute.xlu0 0
          %1727 = vperm.xlu0 %1726, %v1685
          %v1728 = vpop.permute.xlu0 %1727
          %1731 = vset.pattern.permute.xlu0 0
          %1732 = vperm.xlu0 %1731, %v1686
          %v1733 = vpop.permute.xlu0 %1732
          %1736 = vset.pattern.permute.xlu0 0
          %1737 = vperm.xlu0 %1736, %v1687
          %v1738 = vpop.permute.xlu0 %1737
          %1741 = vset.pattern.permute.xlu0 0
          %1742 = vperm.xlu0 %1741, %v1688
          %v1743 = vpop.permute.xlu0 %1742
          %1746 = vset.pattern.permute.xlu0 0
          %1747 = vperm.xlu0 %1746, %v1689
          %v1748 = vpop.permute.xlu0 %1747
          %1751 = vset.pattern.permute.xlu0 0
          %1752 = vperm.xlu0 %1751, %v1690
          %v1753 = vpop.permute.xlu0 %1752
          %1756 = vset.pattern.permute.xlu0 0
          %1757 = vperm.xlu0 %1756, %v1691
          %v1758 = vpop.permute.xlu0 %1757
          %1761 = vset.pattern.permute.xlu0 0
          %1762 = vperm.xlu0 %1761, %v1692
          %v1763 = vpop.permute.xlu0 %1762
          %1766 = vset.pattern.permute.xlu0 0
          %1767 = vperm.xlu0 %1766, %v1693
          %v1768 = vpop.permute.xlu0 %1767
          %1771 = vset.pattern.permute.xlu0 0
          %1772 = vperm.xlu0 %1771, %v1694
          %v1773 = vpop.permute.xlu0 %1772
          %1776 = vset.pattern.permute.xlu0 0
          %1777 = vperm.xlu0 %1776, %v1695
          %v1778 = vpop.permute.xlu0 %1777
          %1781 = vset.pattern.permute.xlu0 0
          %1782 = vperm.xlu0 %1781, %v1696
          %v1783 = vpop.permute.xlu0 %1782
          %1786 = vset.pattern.permute.xlu0 0
          %1787 = vperm.xlu0 %1786, %v1697
          %v1788 = vpop.permute.xlu0 %1787
          %1791 = vset.pattern.permute.xlu0 0
          %1792 = vperm.xlu0 %1791, %v1698
          %v1793 = vpop.permute.xlu0 %1792
          %v1795 = vmul.f32 %v1699, %v1718
          %v1796 = vmul.f32 %v1700, %v1723
          %v1797 = vmul.f32 %v1701, %v1728
          %v1798 = vmul.f32 %v1702, %v1733
          %v1799 = vmul.f32 %v1703, %v1738
          %v1800 = vmul.f32 %v1704, %v1743
          %v1801 = vmul.f32 %v1705, %v1748
          %v1802 = vmul.f32 %v1706, %v1753
          %v1803 = vmul.f32 %v1707, %v1758
          %v1804 = vmul.f32 %v1708, %v1763
          %v1805 = vmul.f32 %v1709, %v1768
          %v1806 = vmul.f32 %v1710, %v1773
          %v1807 = vmul.f32 %v1711, %v1778
          %v1808 = vmul.f32 %v1712, %v1783
          %v1809 = vmul.f32 %v1713, %v1788
          %v1810 = vmul.f32 %v1714, %v1793
          %v1811 = vld [vmem:[%s5] sm:$0xff]
          %v1812 = vld [vmem:[%s5 + $0x8] sm:$0xff]
          %v1813 = vld [vmem:[%s5 + $0x10] sm:$0xff]
          %v1814 = vld [vmem:[%s5 + $0x18] sm:$0xff]
          %v1815 = vld [vmem:[%s5 + $0x20] sm:$0xff]
          %v1816 = vld [vmem:[%s5 + $0x28] sm:$0xff]
          %v1817 = vld [vmem:[%s5 + $0x30] sm:$0xff]
          %v1818 = vld [vmem:[%s5 + $0x38] sm:$0xff]
          %v1819 = vld [vmem:[%s5 + $0x40] sm:$0xff]
          %v1820 = vld [vmem:[%s5 + $0x48] sm:$0xff]
          %v1821 = vld [vmem:[%s5 + $0x50] sm:$0xff]
          %v1822 = vld [vmem:[%s5 + $0x58] sm:$0xff]
          %v1823 = vld [vmem:[%s5 + $0x60] sm:$0xff]
          %v1824 = vld [vmem:[%s5 + $0x68] sm:$0xff]
          %v1825 = vld [vmem:[%s5 + $0x70] sm:$0xff]
          %v1826 = vld [vmem:[%s5 + $0x78] sm:$0xff]
          %v1827 = vld [vmem:[%s6] sm:$0xff]
          %v1828 = vld [vmem:[%s6 + $0x8] sm:$0xff]
          %v1829 = vld [vmem:[%s6 + $0x10] sm:$0xff]
          %v1830 = vld [vmem:[%s6 + $0x18] sm:$0xff]
          %v1831 = vld [vmem:[%s6 + $0x20] sm:$0xff]
          %v1832 = vld [vmem:[%s6 + $0x28] sm:$0xff]
          %v1833 = vld [vmem:[%s6 + $0x30] sm:$0xff]
          %v1834 = vld [vmem:[%s6 + $0x38] sm:$0xff]
          %v1835 = vld [vmem:[%s6 + $0x40] sm:$0xff]
          %v1836 = vld [vmem:[%s6 + $0x48] sm:$0xff]
          %v1837 = vld [vmem:[%s6 + $0x50] sm:$0xff]
          %v1838 = vld [vmem:[%s6 + $0x58] sm:$0xff]
          %v1839 = vld [vmem:[%s6 + $0x60] sm:$0xff]
          %v1840 = vld [vmem:[%s6 + $0x68] sm:$0xff]
          %v1841 = vld [vmem:[%s6 + $0x70] sm:$0xff]
          %v1842 = vld [vmem:[%s6 + $0x78] sm:$0xff]
          %1844 = vset.pattern.permute.xlu0 0
          %1845 = vperm.xlu0 %1844, %v1827
          %v1846 = vpop.permute.xlu0 %1845
          %1849 = vset.pattern.permute.xlu0 0
          %1850 = vperm.xlu0 %1849, %v1828
          %v1851 = vpop.permute.xlu0 %1850
          %1854 = vset.pattern.permute.xlu0 0
          %1855 = vperm.xlu0 %1854, %v1829
          %v1856 = vpop.permute.xlu0 %1855
          %1859 = vset.pattern.permute.xlu0 0
          %1860 = vperm.xlu0 %1859, %v1830
          %v1861 = vpop.permute.xlu0 %1860
          %1864 = vset.pattern.permute.xlu0 0
          %1865 = vperm.xlu0 %1864, %v1831
          %v1866 = vpop.permute.xlu0 %1865
          %1869 = vset.pattern.permute.xlu0 0
          %1870 = vperm.xlu0 %1869, %v1832
          %v1871 = vpop.permute.xlu0 %1870
          %1874 = vset.pattern.permute.xlu0 0
          %1875 = vperm.xlu0 %1874, %v1833
          %v1876 = vpop.permute.xlu0 %1875
          %1879 = vset.pattern.permute.xlu0 0
          %1880 = vperm.xlu0 %1879, %v1834
          %v1881 = vpop.permute.xlu0 %1880
          %1884 = vset.pattern.permute.xlu0 0
          %1885 = vperm.xlu0 %1884, %v1835
          %v1886 = vpop.permute.xlu0 %1885
          %1889 = vset.pattern.permute.xlu0 0
          %1890 = vperm.xlu0 %1889, %v1836
          %v1891 = vpop.permute.xlu0 %1890
          %1894 = vset.pattern.permute.xlu0 0
          %1895 = vperm.xlu0 %1894, %v1837
          %v1896 = vpop.permute.xlu0 %1895
          %1899 = vset.pattern.permute.xlu0 0
          %1900 = vperm.xlu0 %1899, %v1838
          %v1901 = vpop.permute.xlu0 %1900
          %1904 = vset.pattern.permute.xlu0 0
          %1905 = vperm.xlu0 %1904, %v1839
          %v1906 = vpop.permute.xlu0 %1905
          %1909 = vset.pattern.permute.xlu0 0
          %1910 = vperm.xlu0 %1909, %v1840
          %v1911 = vpop.permute.xlu0 %1910
          %1914 = vset.pattern.permute.xlu0 0
          %1915 = vperm.xlu0 %1914, %v1841
          %v1916 = vpop.permute.xlu0 %1915
          %1919 = vset.pattern.permute.xlu0 0
          %1920 = vperm.xlu0 %1919, %v1842
          %v1921 = vpop.permute.xlu0 %1920
          %1923 = vmatprep.subr.mxu0 0.0
          %1924 = vmatpush1.xpose.msra.mxu0 %v1795
          %1925 = vmatprep.subr.mxu0 0.0
          %1926 = vmatpush1.xpose.msra.mxu0 %v1796
          %1927 = vmatprep.subr.mxu0 0.0
          %1928 = vmatpush1.xpose.msra.mxu0 %v1797
          %1929 = vmatprep.subr.mxu0 0.0
          %1930 = vmatpush1.xpose.msra.mxu0 %v1798
          %1931 = vmatprep.subr.mxu0 0.0
          %1932 = vmatpush1.xpose.msra.mxu0 %v1799
          %1933 = vmatprep.subr.mxu0 0.0
          %1934 = vmatpush1.xpose.msra.mxu0 %v1800
          %1935 = vmatprep.subr.mxu0 0.0
          %1936 = vmatpush1.xpose.msra.mxu0 %v1801
          %1937 = vmatprep.subr.mxu0 0.0
          %1938 = vmatpush1.xpose.msra.mxu0 %v1802
          %1939 = vmatprep.subr.mxu0 0.0
          %1940 = vmatpush1.xpose.msra.mxu0 %v1803
          %1941 = vmatprep.subr.mxu0 0.0
          %1942 = vmatpush1.xpose.msra.mxu0 %v1804
          %1943 = vmatprep.subr.mxu0 0.0
          %1944 = vmatpush1.xpose.msra.mxu0 %v1805
          %1945 = vmatprep.subr.mxu0 0.0
          %1946 = vmatpush1.xpose.msra.mxu0 %v1806
          %1947 = vmatprep.subr.mxu0 0.0
          %1948 = vmatpush1.xpose.msra.mxu0 %v1807
          %1949 = vmatprep.subr.mxu0 0.0
          %1950 = vmatpush1.xpose.msra.mxu0 %v1808
          %1951 = vmatprep.subr.mxu0 0.0
          %1952 = vmatpush1.xpose.msra.mxu0 %v1809
          %1953 = vmatprep.subr.mxu0 0.0
          %1954 = vmatpush1.xpose.msra.mxu0 %v1810
          %1955 = vmatprep.subr.mxu0 0.0
          %1956 = vmatpush1.xpose.msra.mxu0 0.0
          %1957 = vmatprep.subr.mxu0 0.0
          %1958 = vmatpush1.xpose.msra.mxu0 0.0
          %1959 = vmatprep.subr.mxu0 0.0
          %1960 = vmatpush1.xpose.msra.mxu0 0.0
          %1961 = vmatprep.subr.mxu0 0.0
          %1962 = vmatpush1.xpose.msra.mxu0 0.0
          %1963 = vmatprep.subr.mxu0 0.0
          %1964 = vmatpush1.xpose.msra.mxu0 0.0
          %1965 = vmatprep.subr.mxu0 0.0
          %1966 = vmatpush1.xpose.msra.mxu0 0.0
          %1967 = vmatprep.subr.mxu0 0.0
          %1968 = vmatpush1.xpose.msra.mxu0 0.0
          %1969 = vmatprep.subr.mxu0 0.0
          %1970 = vmatpush1.xpose.msra.mxu0 0.0
          %1971 = vmatprep.subr.mxu0 0.0
          %1972 = vmatpush1.xpose.msra.mxu0 0.0
          %1973 = vmatprep.subr.mxu0 0.0
          %1974 = vmatpush1.xpose.msra.mxu0 0.0
          %1975 = vmatprep.subr.mxu0 0.0
          %1976 = vmatpush1.xpose.msra.mxu0 0.0
          %1977 = vmatprep.subr.mxu0 0.0
          %1978 = vmatpush1.xpose.msra.mxu0 0.0
          %1979 = vmatprep.subr.mxu0 0.0
          %1980 = vmatpush1.xpose.msra.mxu0 0.0
          %1981 = vmatprep.subr.mxu0 0.0
          %1982 = vmatpush1.xpose.msra.mxu0 0.0
          %1983 = vmatprep.subr.mxu0 0.0
          %1984 = vmatpush1.xpose.msra.mxu0 0.0
          %1985 = vmatprep.subr.mxu0 0.0
          %1986 = vmatpush1.xpose.msra.mxu0 0.0
          %1987 = vmatprep.mubr.f32.mxu0 0.0
          %1988 = vmatmul.mubr.f32.gmra.mrb[0].mxu0 %v1811
          %v1989 = vpop.f32.mrb[0].mxu0
          %v1990 = vadd.f32 %v1846, %v1989
          %v1991 = vpop.f32.mrb[0].mxu0
          %1992 = vmatprep.mubr.f32.mxu0 0.0
          %1993 = vmatmul.mubr.f32.gmra.mrb[0].mxu0 %v1812
          %v1994 = vpop.f32.mrb[0].mxu0
          %v1995 = vadd.f32 %v1851, %v1994
          %v1996 = vpop.f32.mrb[0].mxu0
          %1997 = vmatprep.mubr.f32.mxu0 0.0
          %1998 = vmatmul.mubr.f32.gmra.mrb[0].mxu0 %v1813
          %v1999 = vpop.f32.mrb[0].mxu0
          %v2000 = vadd.f32 %v1856, %v1999
          %v2001 = vpop.f32.mrb[0].mxu0
          %2002 = vmatprep.mubr.f32.mxu0 0.0
          %2003 = vmatmul.mubr.f32.gmra.mrb[0].mxu0 %v1814
          %v2004 = vpop.f32.mrb[0].mxu0
          %v2005 = vadd.f32 %v1861, %v2004
          %v2006 = vpop.f32.mrb[0].mxu0
          %2007 = vmatprep.mubr.f32.mxu0 0.0
          %2008 = vmatmul.mubr.f32.gmra.mrb[0].mxu0 %v1815
          %v2009 = vpop.f32.mrb[0].mxu0
          %v2010 = vadd.f32 %v1866, %v2009
          %v2011 = vpop.f32.mrb[0].mxu0
          %2012 = vmatprep.mubr.f32.mxu0 0.0
          %2013 = vmatmul.mubr.f32.gmra.mrb[0].mxu0 %v1816
          %v2014 = vpop.f32.mrb[0].mxu0
          %v2015 = vadd.f32 %v1871, %v2014
          %v2016 = vpop.f32.mrb[0].mxu0
          %2017 = vmatprep.mubr.f32.mxu0 0.0
          %2018 = vmatmul.mubr.f32.gmra.mrb[0].mxu0 %v1817
          %v2019 = vpop.f32.mrb[0].mxu0
          %v2020 = vadd.f32 %v1876, %v2019
          %v2021 = vpop.f32.mrb[0].mxu0
          %2022 = vmatprep.mubr.f32.mxu0 0.0
          %2023 = vmatmul.mubr.f32.gmra.mrb[0].mxu0 %v1818
          %v2024 = vpop.f32.mrb[0].mxu0
          %v2025 = vadd.f32 %v1881, %v2024
          %v2026 = vpop.f32.mrb[0].mxu0
          %2027 = vmatprep.mubr.f32.mxu0 0.0
          %2028 = vmatmul.mubr.f32.gmra.mrb[0].mxu0 %v1819
          %v2029 = vpop.f32.mrb[0].mxu0
          %v2030 = vadd.f32 %v1886, %v2029
          %v2031 = vpop.f32.mrb[0].mxu0
          %2032 = vmatprep.mubr.f32.mxu0 0.0
          %2033 = vmatmul.mubr.f32.gmra.mrb[0].mxu0 %v1820
          %v2034 = vpop.f32.mrb[0].mxu0
          %v2035 = vadd.f32 %v1891, %v2034
          %v2036 = vpop.f32.mrb[0].mxu0
          %2037 = vmatprep.mubr.f32.mxu0 0.0
          %2038 = vmatmul.mubr.f32.gmra.mrb[0].mxu0 %v1821
          %v2039 = vpop.f32.mrb[0].mxu0
          %v2040 = vadd.f32 %v1896, %v2039
          %v2041 = vpop.f32.mrb[0].mxu0
          %2042 = vmatprep.mubr.f32.mxu0 0.0
          %2043 = vmatmul.mubr.f32.gmra.mrb[0].mxu0 %v1822
          %v2044 = vpop.f32.mrb[0].mxu0
          %v2045 = vadd.f32 %v1901, %v2044
          %v2046 = vpop.f32.mrb[0].mxu0
          %2047 = vmatprep.mubr.f32.mxu0 0.0
          %2048 = vmatmul.mubr.f32.gmra.mrb[0].mxu0 %v1823
          %v2049 = vpop.f32.mrb[0].mxu0
          %v2050 = vadd.f32 %v1906, %v2049
          %v2051 = vpop.f32.mrb[0].mxu0
          %2052 = vmatprep.mubr.f32.mxu0 0.0
          %2053 = vmatmul.mubr.f32.gmra.mrb[0].mxu0 %v1824
          %v2054 = vpop.f32.mrb[0].mxu0
          %v2055 = vadd.f32 %v1911, %v2054
          %v2056 = vpop.f32.mrb[0].mxu0
          %2057 = vmatprep.mubr.f32.mxu0 0.0
          %2058 = vmatmul.mubr.f32.gmra.mrb[0].mxu0 %v1825
          %v2059 = vpop.f32.mrb[0].mxu0
          %v2060 = vadd.f32 %v1916, %v2059
          %v2061 = vpop.f32.mrb[0].mxu0
          %2062 = vmatprep.mubr.f32.mxu0 0.0
          %2063 = vmatmul.mubr.f32.gmra.mrb[0].mxu0 %v1826
          %v2064 = vpop.f32.mrb[0].mxu0
          %v2065 = vadd.f32 %v1921, %v2064
          %v2066 = vpop.f32.mrb[0].mxu0
          %2067 = vdwg.mxu0
          %v2068 = vld [vmem:[%s346] sm:$0xff]
          %v2069 = vld [vmem:[%s346 + $0x8] sm:$0xff]
          %v2070 = vld [vmem:[%s346 + $0x10] sm:$0xff]
          %v2071 = vld [vmem:[%s346 + $0x18] sm:$0xff]
          %v2072 = vld [vmem:[%s346 + $0x20] sm:$0xff]
          %v2073 = vld [vmem:[%s346 + $0x28] sm:$0xff]
          %v2074 = vld [vmem:[%s346 + $0x30] sm:$0xff]
          %v2075 = vld [vmem:[%s346 + $0x38] sm:$0xff]
          %v2076 = vld [vmem:[%s346 + $0x40] sm:$0xff]
          %v2077 = vld [vmem:[%s346 + $0x48] sm:$0xff]
          %v2078 = vld [vmem:[%s346 + $0x50] sm:$0xff]
          %v2079 = vld [vmem:[%s346 + $0x58] sm:$0xff]
          %v2080 = vld [vmem:[%s346 + $0x60] sm:$0xff]
          %v2081 = vld [vmem:[%s346 + $0x68] sm:$0xff]
          %v2082 = vld [vmem:[%s346 + $0x70] sm:$0xff]
          %v2083 = vld [vmem:[%s346 + $0x78] sm:$0xff]
          %v2084 = vadd.f32 %v1990, %v2068
          %v2085 = vadd.f32 %v1995, %v2069
          %v2086 = vadd.f32 %v2000, %v2070
          %v2087 = vadd.f32 %v2005, %v2071
          %v2088 = vadd.f32 %v2010, %v2072
          %v2089 = vadd.f32 %v2015, %v2073
          %v2090 = vadd.f32 %v2020, %v2074
          %v2091 = vadd.f32 %v2025, %v2075
          %v2092 = vadd.f32 %v2030, %v2076
          %v2093 = vadd.f32 %v2035, %v2077
          %v2094 = vadd.f32 %v2040, %v2078
          %v2095 = vadd.f32 %v2045, %v2079
          %v2096 = vadd.f32 %v2050, %v2080
          %v2097 = vadd.f32 %v2055, %v2081
          %v2098 = vadd.f32 %v2060, %v2082
          %v2099 = vadd.f32 %v2065, %v2083
          %2100 = vst [vmem:[%s404] sm:$0xff] %v2084
          %2101 = vst [vmem:[%s404 + $0x8] sm:$0xff] %v2085
          %2102 = vst [vmem:[%s404 + $0x10] sm:$0xff] %v2086
          %2103 = vst [vmem:[%s404 + $0x18] sm:$0xff] %v2087
          %2104 = vst [vmem:[%s404 + $0x20] sm:$0xff] %v2088
          %2105 = vst [vmem:[%s404 + $0x28] sm:$0xff] %v2089
          %2106 = vst [vmem:[%s404 + $0x30] sm:$0xff] %v2090
          %2107 = vst [vmem:[%s404 + $0x38] sm:$0xff] %v2091
          %2108 = vst [vmem:[%s404 + $0x40] sm:$0xff] %v2092
          %2109 = vst [vmem:[%s404 + $0x48] sm:$0xff] %v2093
          %2110 = vst [vmem:[%s404 + $0x50] sm:$0xff] %v2094
          %2111 = vst [vmem:[%s404 + $0x58] sm:$0xff] %v2095
          %2112 = vst [vmem:[%s404 + $0x60] sm:$0xff] %v2096
          %2113 = vst [vmem:[%s404 + $0x68] sm:$0xff] %v2097
          %2114 = vst [vmem:[%s404 + $0x70] sm:$0xff] %v2098
          %2115 = vst [vmem:[%s404 + $0x78] sm:$0xff] %v2099
        $region68: #{tpu_custom_call.1} parent=47 // pred_fallthru
          _
        %s2116 = sand.u32 %s224, 1
        %s2117 = scalar_lea.sflag [#allocation8], %s2116
        %s2118 = sand.u32 %s224, 1
        %s2119 = smul.addr %s2118, 128
        %s2120 = scalar_lea.vmem [#allocation12], %s2119
        // Predicated region
        $region69: #{tpu_custom_call.1} parent=47 // pred_check
          %p2121 = pneg %p234
        $region70: #{tpu_custom_call.1} parent=47 // pred_check_branch
          %2123 = sbr.rel (%p2121) target = $region72
        $region71: #{tpu_custom_call.1} parent=47 // pred_region
          %s2125 = ssub.s32 2048, 2048
          %2126 = vsyncadd %s2117, %s2125
          %s2127 = smul.addr %s32, 32
          %s2128 = sadd.s32 %s33, %s2127
          %s2129 = smul.addr %s2128, 128
          %s2130 = scalar_lea.hbm %s7, %s2129
          %s2131 = sshll.u32 %s2120, 4
          %s2132 = int_to_ptr.vmem [resolvable:$true] %s2131
          %2137 = dma.vmem_to_hbm [thread:$0]  %s2132, 2048, %s2130, %s2117, 128, 256, 8
        $region72: #{tpu_custom_call.1} parent=47 // pred_fallthru
          _
      $region48: #{tpu_custom_call.1} parent=5 // pred_fallthru
        _
      %p2138 = scmp.le.s32.totalorder 2, %s22
      // Predicated region
      $region73: #{tpu_custom_call.1} parent=5 // pred_check
        %p2139 = pneg %p2138
      $region74: #{tpu_custom_call.1} parent=5 // pred_check_branch
        %2141 = sbr.rel (%p2139) target = $region76
      $region75: #{tpu_custom_call.1} parent=5 // pred_region
        %s2142 = ssub.s32 %s22, 2
        // Predicated region
        $region77: #{tpu_custom_call.1} parent=75 // pred_check
          %p2143 = pneg %p240
        $region78: #{tpu_custom_call.1} parent=75 // pred_check_branch
          %2145 = sbr.rel (%p2143) target = $region80
        $region79: #{tpu_custom_call.1} parent=75 // pred_region
          %s2146 = sand.u32 %s225, 1
          %s2147 = scalar_lea.sflag [#allocation8], %s2146
          %s2148 = sand.u32 %s225, 1
          %s2149 = smul.addr %s2148, 128
          %s2150 = scalar_lea.vmem [#allocation12], %s2149
          %2151 = dma.done %s2147, 2048
        $region80: #{tpu_custom_call.1} parent=75 // pred_fallthru
          _
      $region76: #{tpu_custom_call.1} parent=5 // pred_fallthru
        _
    $region6: #{tpu_custom_call.1} parent=1 // loop_footer
      %s26 = sadd.s32 1, %s22
    $region7: #{tpu_custom_call.1} parent=1 // loop_footer_branch
      %21 = sbr.rel target = $region3
    $region8: #{tpu_custom_call.1} parent=1 // loop_exit
      _
    %2152 = vsyncpa [#allocation7], 1
    %s2153 = scalar_lea.sflag [#allocation7], 1
    %2154 = vsyncpa %s2153, 1
    %2155 = vsyncpa [#allocation10], 1
    %s2156 = scalar_lea.sflag [#allocation10], 1
    %2157 = vsyncpa %s2156, 1
    %2158 = vsyncpa [#allocation8], 1
    %s2159 = scalar_lea.sflag [#allocation8], 1
    %2160 = vsyncpa %s2159, 1

</llo_original>
